<compile_context>
chip_gen: v6e
topology: v6e:2x2x1
jax: 0.10.0
libtpu: 0.0.40
codegen_flags: <defaults>
</compile_context>

<pallas_src>
import jax
import jax.numpy as jnp
from jax.experimental import pallas as pl
from jax.experimental.pallas import tpu as pltpu

LEAKY_SLOPE = 0.01   # nn.LeakyReLU default
BN_EPS = 1e-5        # nn.BatchNorm1d default


def _round_up(x, m):
    return ((x + m - 1) // m) * m


def _mlp(h, param_refs, cfg):
    """AugmentedMLP on an in-VMEM activation value.

    cfg: static tuple of (has_leaky_relu, has_batchnorm) per Linear layer.
    param_refs layout per layer: W (bf16, (in,out)), b (f32, (1,out)),
    then [gamma, beta] (f32, (1,out)) iff has_batchnorm.
    """
    idx = 0
    for has_act, has_bn in cfg:
        W = param_refs[idx][...]          # bf16, MXU-native
        b = param_refs[idx + 1][...]      # f32
        idx += 2
        h = jnp.dot(h.astype(jnp.bfloat16), W,
                    preferred_element_type=jnp.float32) + b
        if has_act:
            h = jnp.maximum(h, LEAKY_SLOPE * h)          # LeakyReLU(0.01) as one vmax
        if has_bn:
            gamma = param_refs[idx][...]
            beta = param_refs[idx + 1][...]
            idx += 2
            # Two-pass biased batch variance (closer to PyTorch than E[h^2]-mu^2).
            mu = jnp.mean(h, axis=0, keepdims=True)
            d = h - mu
            var = jnp.mean(d * d, axis=0, keepdims=True)
            h = d * jax.lax.rsqrt(var + BN_EPS) * gamma + beta
    return h


def _make_disentangler_kernel(mapin_cfg, mapout_cfg, n_mapin, n_mapout, knee, knee_pad):
    def kernel(*refs):
        w_ref, mean_ref, mat_ref = refs[0], refs[1], refs[2]
        mapin_refs = refs[3:3 + n_mapin]
        mapout_refs = refs[3 + n_mapin:3 + n_mapin + n_mapout]
        w_out_ref = refs[3 + n_mapin + n_mapout]
        c_ref = refs[3 + n_mapin + n_mapout + 1]

        mean = mean_ref[...]                  # (1, D) f32
        mat = mat_ref[...]                    # (D, D) f32
        D = mat.shape[1]

        # ---- PCA forward: (w - mean) @ pca_mat.T (contract last axes; no host transpose).
        # f32 operands -> Mosaic runs real f32 MXU passes (round-trip fidelity).
        wc = w_ref[...] - mean
        w_pca = jax.lax.dot_general(
            wc, mat, (((1,), (1,)), ((), ())),
            preferred_element_type=jnp.float32)

        # ---- Encoder (Mapin). First Linear is zero-row-padded knee -> knee_pad, so the
        # lane-tile-aligned slice [:, :knee_pad] is equivalent to feeding w_pca[:, :knee].
        c = _mlp(w_pca[:, :knee_pad], mapin_refs, mapin_cfg)     # (B, c_pad), exact zeros
        c_ref[...] = c.astype(c_ref.dtype)                       # beyond latent_size

        # ---- Decoder (Mapout). First Linear zero-row-padded latent -> c_pad; last Linear
        # zero-col-padded knee -> knee_pad, so `mapped` has exact zeros in cols >= knee.
        mapped = _mlp(c, mapout_refs, mapout_cfg)                # (B, knee_pad)

        # ---- torch.cat((mapped, w_pca[:, knee:]), 1) with only tile-aligned ops:
        head_cols = w_pca[:, :knee_pad]                          # static, lane-tile aligned
        col = jax.lax.broadcasted_iota(jnp.int32, head_cols.shape, 1)
        head = mapped + jnp.where(col >= knee, head_cols, 0.0)
        if knee_pad >= D:
            w_out_reduced = head
        else:
            w_out_reduced = jnp.concatenate([head, w_pca[:, knee_pad:]], axis=1)

        # ---- PCA inverse: x @ pca_mat + mean (f32).
        w_out = jnp.dot(w_out_reduced, mat, preferred_element_type=jnp.float32) + mean
        w_out_ref[...] = w_out.astype(w_out_ref.dtype)

    return kernel


def disentangler_forward(w, pca_mean, pca_mat,
                         mapin_cfg, mapin_params,
                         mapout_cfg, mapout_params,
                         knee, latent_size):
    """w: (B, D) single forward (module semantics) or (G, B, D) = G independent forwards
    sharing one weight DMA.  Returns (w_out, c) with matching leading shape."""
    squeeze = False
    if w.ndim == 2:
        w = w[None]
        squeeze = True
    assert w.ndim == 3, "w must be (batch, dim) or (groups, batch, dim)"
    G, B, D = w.shape

    # Padded widths are baked into the parameters; recover and sanity-check them.
    knee_pad = mapin_params[0].shape[0]     # Mapin first Linear in-rows
    c_pad = mapout_params[0].shape[0]       # Mapout first Linear in-rows (= padded latent)
    assert knee <= knee_pad <= D
    assert latent_size <= c_pad
    idx = 0
    for has_act, has_bn in mapin_cfg[:-1]:
        idx += 4 if has_bn else 2
    assert mapin_params[idx].shape[1] == c_pad, "encoder output width must equal c_pad"

    args = [w, pca_mean, pca_mat] + list(mapin_params) + list(mapout_params)
    kernel = _make_disentangler_kernel(
        mapin_cfg, mapout_cfg, len(mapin_params), len(mapout_params), knee, knee_pad)

    # Constant index_map -> weights / PCA basis DMA'd once, resident across grid steps.
    def const_spec(a):
        return pl.BlockSpec(a.shape, lambda g, _n=a.ndim: (0,) * _n)

    in_specs = ([pl.BlockSpec((None, B, D), lambda g: (g, 0, 0))] +
                [const_spec(a) for a in args[1:]])
    out_specs = (pl.BlockSpec((None, B, D), lambda g: (g, 0, 0)),
                 pl.BlockSpec((None, B, c_pad), lambda g: (g, 0, 0)))
    out_shape = (jax.ShapeDtypeStruct((G, B, D), jnp.float32),
                 jax.ShapeDtypeStruct((G, B, c_pad), jnp.float32))

    # Right-size scoped VMEM: resident weights (single copy) + 2x pipelined per-step blocks
    # + headroom; clamp well below v7x's 64 MiB physical VMEM.
    weight_bytes = sum(int(a.size) * a.dtype.itemsize for a in args[1:])
    step_bytes = B * D * 4 * 2 + B * c_pad * 4
    vmem_limit = int(min(56 << 20, max(24 << 20, weight_bytes + 2 * step_bytes + (8 << 20))))

    w_out, c_full = pl.pallas_call(
        kernel,
        grid=(G,),
        in_specs=in_specs,
        out_specs=out_specs,
        out_shape=out_shape,
        compiler_params=pltpu.CompilerParams(
            dimension_semantics=("parallel",),   # v7x: both TensorCores take grid steps
            vmem_limit_bytes=vmem_limit),
    )(*args)

    c = c_full[..., :latent_size]                # drop lane-padding outside the kernel
    if squeeze:
        return w_out[0], c[0]
    return w_out, c


# ------------------- parameter construction (deterministic, synthetic) -------------------
def init_mlp_params(key, insize, hiddensize, outsize, layer_nb, batch_norm, bn_output,
                    pad_insize_to=None, pad_outsize_to=None):
    """Build AugmentedMLP params. Weights stored (in, out) so the kernel computes x @ W + b.

    pad_insize_to : zero-ROW-pad the first Linear's weight so the kernel can feed a wider
                    lane-dense input slab (equivalent to slicing the input to `insize`).
    pad_outsize_to: zero-COLUMN-pad the last Linear's weight/bias (and, if it has BatchNorm,
                    pad gamma with 1 and beta with 0) so the padded output columns are
                    exactly zero.
    """
    layer_cfg = []
    params = []
    for k in range(layer_nb):
        if k == 0:
            fin, fout = insize, hiddensize
        elif k == layer_nb - 1:
            fin, fout = hiddensize, outsize
        else:
            fin, fout = hiddensize, hiddensize
        has_act = k != layer_nb - 1
        has_bn = batch_norm and (has_act or bn_output)
        layer_cfg.append((has_act, has_bn))

        key, kw, kb = jax.random.split(key, 3)
        bound = 1.0 / (fin ** 0.5)  # PyTorch Linear default init range
        W = jax.random.uniform(kw, (fin, fout), jnp.float32, -bound, bound)
        b = jax.random.uniform(kb, (1, fout), jnp.float32, -bound, bound)
        gamma = jnp.ones((1, fout), jnp.float32) if has_bn else None
        beta = jnp.zeros((1, fout), jnp.float32) if has_bn else None

        if k == 0 and pad_insize_to is not None and pad_insize_to > fin:
            W = jnp.concatenate(
                [W, jnp.zeros((pad_insize_to - fin, fout), jnp.float32)], axis=0)
        if k == layer_nb - 1 and pad_outsize_to is not None and pad_outsize_to > fout:
            pad = pad_outsize_to - fout
            W = jnp.concatenate([W, jnp.zeros((W.shape[0], pad), jnp.float32)], axis=1)
            b = jnp.concatenate([b, jnp.zeros((1, pad), jnp.float32)], axis=1)
            if has_bn:
                # gamma=1 / beta=0 in padded columns -> padded outputs are exactly 0 after BN.
                gamma = jnp.concatenate([gamma, jnp.ones((1, pad), jnp.float32)], axis=1)
                beta = jnp.concatenate([beta, jnp.zeros((1, pad), jnp.float32)], axis=1)

        params.append(W.astype(jnp.bfloat16))   # MXU-native weights, f32 accumulation
        params.append(b)                        # bias stays f32
        if has_bn:
            params.append(gamma)
            params.append(beta)
    return tuple(layer_cfg), params


if __name__ == "__main__":
    # Small lane-friendly shapes consistent with the module
    # (original: D=512, knee=60, hidden=512, layer_nb=8).
    G = 4                 # independent batches sharing one weight DMA (grid axis)
    B, D = 8, 256         # per-batch size, W-latent dimension
    KNEE = 32             # PCA dimensions kept
    LATENT = 32           # C latent size (defaults to knee)
    HIDDEN = 128
    LAYER_NB = 3
    KNEE_PAD = _round_up(KNEE, 128)
    C_PAD = _round_up(LATENT, 128)

    root = jax.random.PRNGKey(0)
    k_w, k_mean, k_mat, k_in, k_out = jax.random.split(root, 5)

    w = jax.random.normal(k_w, (G, B, D), jnp.float32)
    pca_mean = 0.1 * jax.random.normal(k_mean, (1, D), jnp.float32)
    # synthetic PCA components (orthonormal rows via QR for realism)
    pca_mat = jnp.linalg.qr(jax.random.normal(k_mat, (D, D), jnp.float32))[0]

    mapin_cfg, mapin_params = init_mlp_params(
        k_in, insize=KNEE, hiddensize=HIDDEN, outsize=LATENT,
        layer_nb=LAYER_NB, batch_norm=True, bn_output=True,
        pad_insize_to=KNEE_PAD,        # first Linear consumes w_pca[:, :KNEE_PAD]
        pad_outsize_to=C_PAD)          # lane-dense c slab (padded cols exactly 0 after BN)
    mapout_cfg, mapout_params = init_mlp_params(
        k_out, insize=LATENT, hiddensize=HIDDEN, outsize=KNEE,
        layer_nb=LAYER_NB, batch_norm=True, bn_output=False,
        pad_insize_to=C_PAD,           # consumes the lane-dense c slab
        pad_outsize_to=KNEE_PAD)       # emits a (B, KNEE_PAD) slab, zeros beyond knee

    w_out, c = disentangler_forward(
        w, pca_mean, pca_mat,
        mapin_cfg, mapin_params,
        mapout_cfg, mapout_params,
        knee=KNEE, latent_size=LATENT)

    jax.block_until_ready((w_out, c))
    assert w_out.shape == (G, B, D) and c.shape == (G, B, LATENT)
    assert bool(jnp.all(jnp.isfinite(w_out))) and bool(jnp.all(jnp.isfinite(c)))

    # Module-style single-batch (2-D) call still matches the original interface.
    w1_out, c1 = disentangler_forward(
        w[0], pca_mean, pca_mat,
        mapin_cfg, mapin_params,
        mapout_cfg, mapout_params,
        knee=KNEE, latent_size=LATENT)
    jax.block_until_ready((w1_out, c1))
    assert w1_out.shape == (B, D) and c1.shape == (B, LATENT)
    assert bool(jnp.all(jnp.isfinite(w1_out))) and bool(jnp.all(jnp.isfinite(c1)))

    print("KERNEL_OK")
</pallas_src>

<mosaic_0001>
module attributes {stable_mosaic.version = 11 : i64} {
  func.func @kernel(%arg0: i32, %arg1: memref<1x8x256xf32, #tpu.memory_space<vmem>>, %arg2: memref<1x256xf32, #tpu.memory_space<vmem>>, %arg3: memref<256x256xf32, #tpu.memory_space<vmem>>, %arg4: memref<128x128xbf16, #tpu.memory_space<vmem>>, %arg5: memref<1x128xf32, #tpu.memory_space<vmem>>, %arg6: memref<1x128xf32, #tpu.memory_space<vmem>>, %arg7: memref<1x128xf32, #tpu.memory_space<vmem>>, %arg8: memref<128x128xbf16, #tpu.memory_space<vmem>>, %arg9: memref<1x128xf32, #tpu.memory_space<vmem>>, %arg10: memref<1x128xf32, #tpu.memory_space<vmem>>, %arg11: memref<1x128xf32, #tpu.memory_space<vmem>>, %arg12: memref<128x128xbf16, #tpu.memory_space<vmem>>, %arg13: memref<1x128xf32, #tpu.memory_space<vmem>>, %arg14: memref<1x128xf32, #tpu.memory_space<vmem>>, %arg15: memref<1x128xf32, #tpu.memory_space<vmem>>, %arg16: memref<128x128xbf16, #tpu.memory_space<vmem>>, %arg17: memref<1x128xf32, #tpu.memory_space<vmem>>, %arg18: memref<1x128xf32, #tpu.memory_space<vmem>>, %arg19: memref<1x128xf32, #tpu.memory_space<vmem>>, %arg20: memref<128x128xbf16, #tpu.memory_space<vmem>>, %arg21: memref<1x128xf32, #tpu.memory_space<vmem>>, %arg22: memref<1x128xf32, #tpu.memory_space<vmem>>, %arg23: memref<1x128xf32, #tpu.memory_space<vmem>>, %arg24: memref<128x128xbf16, #tpu.memory_space<vmem>>, %arg25: memref<1x128xf32, #tpu.memory_space<vmem>>, %arg26: memref<1x8x256xf32, #tpu.memory_space<vmem>>, %arg27: memref<1x8x128xf32, #tpu.memory_space<vmem>>) attributes {dimension_semantics = [#tpu.dimension_semantics<parallel>], iteration_bounds = array<i64: 4>, scalar_prefetch = 0 : i64, scratch_operands = 0 : i64, tpu.core_type = #tpu.core_type<tc>, window_params = [{transform_indices = @transform_0, window_bounds = array<i64: 1, 8, 256>}, {pipeline_mode = #tpu.pipeline_mode<synchronous>, transform_indices = @transform_1, window_bounds = array<i64: 1, 256>}, {pipeline_mode = #tpu.pipeline_mode<synchronous>, transform_indices = @transform_2, window_bounds = array<i64: 256, 256>}, {pipeline_mode = #tpu.pipeline_mode<synchronous>, transform_indices = @transform_3, window_bounds = array<i64: 128, 128>}, {pipeline_mode = #tpu.pipeline_mode<synchronous>, transform_indices = @transform_4, window_bounds = array<i64: 1, 128>}, {pipeline_mode = #tpu.pipeline_mode<synchronous>, transform_indices = @transform_5, window_bounds = array<i64: 1, 128>}, {pipeline_mode = #tpu.pipeline_mode<synchronous>, transform_indices = @transform_6, window_bounds = array<i64: 1, 128>}, {pipeline_mode = #tpu.pipeline_mode<synchronous>, transform_indices = @transform_7, window_bounds = array<i64: 128, 128>}, {pipeline_mode = #tpu.pipeline_mode<synchronous>, transform_indices = @transform_8, window_bounds = array<i64: 1, 128>}, {pipeline_mode = #tpu.pipeline_mode<synchronous>, transform_indices = @transform_9, window_bounds = array<i64: 1, 128>}, {pipeline_mode = #tpu.pipeline_mode<synchronous>, transform_indices = @transform_10, window_bounds = array<i64: 1, 128>}, {pipeline_mode = #tpu.pipeline_mode<synchronous>, transform_indices = @transform_11, window_bounds = array<i64: 128, 128>}, {pipeline_mode = #tpu.pipeline_mode<synchronous>, transform_indices = @transform_12, window_bounds = array<i64: 1, 128>}, {pipeline_mode = #tpu.pipeline_mode<synchronous>, transform_indices = @transform_13, window_bounds = array<i64: 1, 128>}, {pipeline_mode = #tpu.pipeline_mode<synchronous>, transform_indices = @transform_14, window_bounds = array<i64: 1, 128>}, {pipeline_mode = #tpu.pipeline_mode<synchronous>, transform_indices = @transform_15, window_bounds = array<i64: 128, 128>}, {pipeline_mode = #tpu.pipeline_mode<synchronous>, transform_indices = @transform_16, window_bounds = array<i64: 1, 128>}, {pipeline_mode = #tpu.pipeline_mode<synchronous>, transform_indices = @transform_17, window_bounds = array<i64: 1, 128>}, {pipeline_mode = #tpu.pipeline_mode<synchronous>, transform_indices = @transform_18, window_bounds = array<i64: 1, 128>}, {pipeline_mode = #tpu.pipeline_mode<synchronous>, transform_indices = @transform_19, window_bounds = array<i64: 128, 128>}, {pipeline_mode = #tpu.pipeline_mode<synchronous>, transform_indices = @transform_20, window_bounds = array<i64: 1, 128>}, {pipeline_mode = #tpu.pipeline_mode<synchronous>, transform_indices = @transform_21, window_bounds = array<i64: 1, 128>}, {pipeline_mode = #tpu.pipeline_mode<synchronous>, transform_indices = @transform_22, window_bounds = array<i64: 1, 128>}, {pipeline_mode = #tpu.pipeline_mode<synchronous>, transform_indices = @transform_23, window_bounds = array<i64: 128, 128>}, {pipeline_mode = #tpu.pipeline_mode<synchronous>, transform_indices = @transform_24, window_bounds = array<i64: 1, 128>}, {transform_indices = @transform_25, window_bounds = array<i64: 1, 8, 256>}, {transform_indices = @transform_26, window_bounds = array<i64: 1, 8, 128>}]} {
    %c0 = arith.constant 0 : index
    %c0_0 = arith.constant 0 : index
    %0 = vector.load %arg2[%c0, %c0_0] : memref<1x256xf32, #tpu.memory_space<vmem>>, vector<1x256xf32>
    %c0_1 = arith.constant 0 : index
    %c0_2 = arith.constant 0 : index
    %1 = vector.load %arg3[%c0_1, %c0_2] : memref<256x256xf32, #tpu.memory_space<vmem>>, vector<256x256xf32>
    %c0_3 = arith.constant 0 : index
    %c0_4 = arith.constant 0 : index
    %c0_5 = arith.constant 0 : index
    %2 = vector.load %arg1[%c0_3, %c0_4, %c0_5] : memref<1x8x256xf32, #tpu.memory_space<vmem>>, vector<1x8x256xf32>
    %3 = vector.shape_cast %2 : vector<1x8x256xf32> to vector<8x256xf32>
    %4 = vector.broadcast %0 : vector<1x256xf32> to vector<8x256xf32>
    %5 = arith.subf %3, %4 : vector<8x256xf32>
    %cst = arith.constant dense<0.000000e+00> : vector<8x256xf32>
    %6 = tpu.matmul %5, %1, %cst {dimension_numbers = #tpu.dot_dimension_numbers<[1], [1], [0], [0], [0, 0, 1, 0], [], []>} : vector<8x256xf32>, vector<256x256xf32>, vector<8x256xf32> -> vector<8x256xf32>
    %7 = vector.extract_strided_slice %6 {offsets = [0, 0], sizes = [8, 128], strides = [1, 1]} : vector<8x256xf32> to vector<8x128xf32>
    %c0_6 = arith.constant 0 : index
    %c0_7 = arith.constant 0 : index
    %8 = vector.load %arg4[%c0_6, %c0_7] : memref<128x128xbf16, #tpu.memory_space<vmem>>, vector<128x128xbf16>
    %c0_8 = arith.constant 0 : index
    %c0_9 = arith.constant 0 : index
    %9 = vector.load %arg5[%c0_8, %c0_9] : memref<1x128xf32, #tpu.memory_space<vmem>>, vector<1x128xf32>
    %10 = arith.truncf %7 : vector<8x128xf32> to vector<8x128xbf16>
    %cst_10 = arith.constant dense<0.000000e+00> : vector<8x128xf32>
    %11 = tpu.matmul %10, %8, %cst_10 {dimension_numbers = #tpu.dot_dimension_numbers<[1], [0], [0], [1], [0, 0, 1, 1], [], []>} : vector<8x128xbf16>, vector<128x128xbf16>, vector<8x128xf32> -> vector<8x128xf32>
    %12 = vector.broadcast %9 : vector<1x128xf32> to vector<8x128xf32>
    %13 = arith.addf %11, %12 : vector<8x128xf32>
    %cst_11 = arith.constant 0.00999999977 : f32
    %14 = vector.broadcast %cst_11 : f32 to vector<8x128xf32>
    %15 = arith.mulf %14, %13 : vector<8x128xf32>
    %16 = arith.maximumf %13, %15 : vector<8x128xf32>
    %c0_12 = arith.constant 0 : index
    %c0_13 = arith.constant 0 : index
    %17 = vector.load %arg6[%c0_12, %c0_13] : memref<1x128xf32, #tpu.memory_space<vmem>>, vector<1x128xf32>
    %c0_14 = arith.constant 0 : index
    %c0_15 = arith.constant 0 : index
    %18 = vector.load %arg7[%c0_14, %c0_15] : memref<1x128xf32, #tpu.memory_space<vmem>>, vector<1x128xf32>
    %cst_16 = arith.constant dense<0.000000e+00> : vector<128xf32>
    %19 = vector.multi_reduction <add>, %16, %cst_16 [0] : vector<8x128xf32> to vector<128xf32>
    %20 = vector.shape_cast %19 : vector<128xf32> to vector<1x128xf32>
    %cst_17 = arith.constant 8.000000e+00 : f32
    %21 = vector.broadcast %cst_17 : f32 to vector<1x128xf32>
    %22 = arith.divf %20, %21 : vector<1x128xf32>
    %23 = vector.broadcast %22 : vector<1x128xf32> to vector<8x128xf32>
    %24 = arith.subf %16, %23 : vector<8x128xf32>
    %25 = arith.mulf %24, %24 : vector<8x128xf32>
    %cst_18 = arith.constant dense<0.000000e+00> : vector<128xf32>
    %26 = vector.multi_reduction <add>, %25, %cst_18 [0] : vector<8x128xf32> to vector<128xf32>
    %27 = vector.shape_cast %26 : vector<128xf32> to vector<1x128xf32>
    %cst_19 = arith.constant 8.000000e+00 : f32
    %28 = vector.broadcast %cst_19 : f32 to vector<1x128xf32>
    %29 = arith.divf %27, %28 : vector<1x128xf32>
    %cst_20 = arith.constant 9.99999974E-6 : f32
    %30 = vector.broadcast %cst_20 : f32 to vector<1x128xf32>
    %31 = arith.addf %29, %30 : vector<1x128xf32>
    %32 = math.rsqrt %31 : vector<1x128xf32>
    %33 = vector.broadcast %32 : vector<1x128xf32> to vector<8x128xf32>
    %34 = arith.mulf %24, %33 : vector<8x128xf32>
    %35 = vector.broadcast %17 : vector<1x128xf32> to vector<8x128xf32>
    %36 = arith.mulf %34, %35 : vector<8x128xf32>
    %37 = vector.broadcast %18 : vector<1x128xf32> to vector<8x128xf32>
    %38 = arith.addf %36, %37 : vector<8x128xf32>
    %c0_21 = arith.constant 0 : index
    %c0_22 = arith.constant 0 : index
    %39 = vector.load %arg8[%c0_21, %c0_22] : memref<128x128xbf16, #tpu.memory_space<vmem>>, vector<128x128xbf16>
    %c0_23 = arith.constant 0 : index
    %c0_24 = arith.constant 0 : index
    %40 = vector.load %arg9[%c0_23, %c0_24] : memref<1x128xf32, #tpu.memory_space<vmem>>, vector<1x128xf32>
    %41 = arith.truncf %38 : vector<8x128xf32> to vector<8x128xbf16>
    %cst_25 = arith.constant dense<0.000000e+00> : vector<8x128xf32>
    %42 = tpu.matmul %41, %39, %cst_25 {dimension_numbers = #tpu.dot_dimension_numbers<[1], [0], [0], [1], [0, 0, 1, 1], [], []>} : vector<8x128xbf16>, vector<128x128xbf16>, vector<8x128xf32> -> vector<8x128xf32>
    %43 = vector.broadcast %40 : vector<1x128xf32> to vector<8x128xf32>
    %44 = arith.addf %42, %43 : vector<8x128xf32>
    %cst_26 = arith.constant 0.00999999977 : f32
    %45 = vector.broadcast %cst_26 : f32 to vector<8x128xf32>
    %46 = arith.mulf %45, %44 : vector<8x128xf32>
    %47 = arith.maximumf %44, %46 : vector<8x128xf32>
    %c0_27 = arith.constant 0 : index
    %c0_28 = arith.constant 0 : index
    %48 = vector.load %arg10[%c0_27, %c0_28] : memref<1x128xf32, #tpu.memory_space<vmem>>, vector<1x128xf32>
    %c0_29 = arith.constant 0 : index
    %c0_30 = arith.constant 0 : index
    %49 = vector.load %arg11[%c0_29, %c0_30] : memref<1x128xf32, #tpu.memory_space<vmem>>, vector<1x128xf32>
    %cst_31 = arith.constant dense<0.000000e+00> : vector<128xf32>
    %50 = vector.multi_reduction <add>, %47, %cst_31 [0] : vector<8x128xf32> to vector<128xf32>
    %51 = vector.shape_cast %50 : vector<128xf32> to vector<1x128xf32>
    %cst_32 = arith.constant 8.000000e+00 : f32
    %52 = vector.broadcast %cst_32 : f32 to vector<1x128xf32>
    %53 = arith.divf %51, %52 : vector<1x128xf32>
    %54 = vector.broadcast %53 : vector<1x128xf32> to vector<8x128xf32>
    %55 = arith.subf %47, %54 : vector<8x128xf32>
    %56 = arith.mulf %55, %55 : vector<8x128xf32>
    %cst_33 = arith.constant dense<0.000000e+00> : vector<128xf32>
    %57 = vector.multi_reduction <add>, %56, %cst_33 [0] : vector<8x128xf32> to vector<128xf32>
    %58 = vector.shape_cast %57 : vector<128xf32> to vector<1x128xf32>
    %cst_34 = arith.constant 8.000000e+00 : f32
    %59 = vector.broadcast %cst_34 : f32 to vector<1x128xf32>
    %60 = arith.divf %58, %59 : vector<1x128xf32>
    %cst_35 = arith.constant 9.99999974E-6 : f32
    %61 = vector.broadcast %cst_35 : f32 to vector<1x128xf32>
    %62 = arith.addf %60, %61 : vector<1x128xf32>
    %63 = math.rsqrt %62 : vector<1x128xf32>
    %64 = vector.broadcast %63 : vector<1x128xf32> to vector<8x128xf32>
    %65 = arith.mulf %55, %64 : vector<8x128xf32>
    %66 = vector.broadcast %48 : vector<1x128xf32> to vector<8x128xf32>
    %67 = arith.mulf %65, %66 : vector<8x128xf32>
    %68 = vector.broadcast %49 : vector<1x128xf32> to vector<8x128xf32>
    %69 = arith.addf %67, %68 : vector<8x128xf32>
    %c0_36 = arith.constant 0 : index
    %c0_37 = arith.constant 0 : index
    %70 = vector.load %arg12[%c0_36, %c0_37] : memref<128x128xbf16, #tpu.memory_space<vmem>>, vector<128x128xbf16>
    %c0_38 = arith.constant 0 : index
    %c0_39 = arith.constant 0 : index
    %71 = vector.load %arg13[%c0_38, %c0_39] : memref<1x128xf32, #tpu.memory_space<vmem>>, vector<1x128xf32>
    %72 = arith.truncf %69 : vector<8x128xf32> to vector<8x128xbf16>
    %cst_40 = arith.constant dense<0.000000e+00> : vector<8x128xf32>
    %73 = tpu.matmul %72, %70, %cst_40 {dimension_numbers = #tpu.dot_dimension_numbers<[1], [0], [0], [1], [0, 0, 1, 1], [], []>} : vector<8x128xbf16>, vector<128x128xbf16>, vector<8x128xf32> -> vector<8x128xf32>
    %74 = vector.broadcast %71 : vector<1x128xf32> to vector<8x128xf32>
    %75 = arith.addf %73, %74 : vector<8x128xf32>
    %c0_41 = arith.constant 0 : index
    %c0_42 = arith.constant 0 : index
    %76 = vector.load %arg14[%c0_41, %c0_42] : memref<1x128xf32, #tpu.memory_space<vmem>>, vector<1x128xf32>
    %c0_43 = arith.constant 0 : index
    %c0_44 = arith.constant 0 : index
    %77 = vector.load %arg15[%c0_43, %c0_44] : memref<1x128xf32, #tpu.memory_space<vmem>>, vector<1x128xf32>
    %cst_45 = arith.constant dense<0.000000e+00> : vector<128xf32>
    %78 = vector.multi_reduction <add>, %75, %cst_45 [0] : vector<8x128xf32> to vector<128xf32>
    %79 = vector.shape_cast %78 : vector<128xf32> to vector<1x128xf32>
    %cst_46 = arith.constant 8.000000e+00 : f32
    %80 = vector.broadcast %cst_46 : f32 to vector<1x128xf32>
    %81 = arith.divf %79, %80 : vector<1x128xf32>
    %82 = vector.broadcast %81 : vector<1x128xf32> to vector<8x128xf32>
    %83 = arith.subf %75, %82 : vector<8x128xf32>
    %84 = arith.mulf %83, %83 : vector<8x128xf32>
    %cst_47 = arith.constant dense<0.000000e+00> : vector<128xf32>
    %85 = vector.multi_reduction <add>, %84, %cst_47 [0] : vector<8x128xf32> to vector<128xf32>
    %86 = vector.shape_cast %85 : vector<128xf32> to vector<1x128xf32>
    %cst_48 = arith.constant 8.000000e+00 : f32
    %87 = vector.broadcast %cst_48 : f32 to vector<1x128xf32>
    %88 = arith.divf %86, %87 : vector<1x128xf32>
    %cst_49 = arith.constant 9.99999974E-6 : f32
    %89 = vector.broadcast %cst_49 : f32 to vector<1x128xf32>
    %90 = arith.addf %88, %89 : vector<1x128xf32>
    %91 = math.rsqrt %90 : vector<1x128xf32>
    %92 = vector.broadcast %91 : vector<1x128xf32> to vector<8x128xf32>
    %93 = arith.mulf %83, %92 : vector<8x128xf32>
    %94 = vector.broadcast %76 : vector<1x128xf32> to vector<8x128xf32>
    %95 = arith.mulf %93, %94 : vector<8x128xf32>
    %96 = vector.broadcast %77 : vector<1x128xf32> to vector<8x128xf32>
    %97 = arith.addf %95, %96 : vector<8x128xf32>
    %c0_50 = arith.constant 0 : index
    %c0_51 = arith.constant 0 : index
    %c0_52 = arith.constant 0 : index
    %98 = vector.load %arg27[%c0_50, %c0_51, %c0_52] : memref<1x8x128xf32, #tpu.memory_space<vmem>>, vector<1x8x128xf32>
    %99 = vector.shape_cast %98 : vector<1x8x128xf32> to vector<8x128xf32>
    %100 = vector.shape_cast %97 : vector<8x128xf32> to vector<1x8x128xf32>
    tpu.vector_store %arg27[%c0_50, %c0_51, %c0_52], %100 {strides = array<i32>} : memref<1x8x128xf32, #tpu.memory_space<vmem>>, vector<1x8x128xf32>,
    %c0_53 = arith.constant 0 : index
    %c0_54 = arith.constant 0 : index
    %101 = vector.load %arg16[%c0_53, %c0_54] : memref<128x128xbf16, #tpu.memory_space<vmem>>, vector<128x128xbf16>
    %c0_55 = arith.constant 0 : index
    %c0_56 = arith.constant 0 : index
    %102 = vector.load %arg17[%c0_55, %c0_56] : memref<1x128xf32, #tpu.memory_space<vmem>>, vector<1x128xf32>
    %103 = arith.truncf %97 : vector<8x128xf32> to vector<8x128xbf16>
    %cst_57 = arith.constant dense<0.000000e+00> : vector<8x128xf32>
    %104 = tpu.matmul %103, %101, %cst_57 {dimension_numbers = #tpu.dot_dimension_numbers<[1], [0], [0], [1], [0, 0, 1, 1], [], []>} : vector<8x128xbf16>, vector<128x128xbf16>, vector<8x128xf32> -> vector<8x128xf32>
    %105 = vector.broadcast %102 : vector<1x128xf32> to vector<8x128xf32>
    %106 = arith.addf %104, %105 : vector<8x128xf32>
    %cst_58 = arith.constant 0.00999999977 : f32
    %107 = vector.broadcast %cst_58 : f32 to vector<8x128xf32>
    %108 = arith.mulf %107, %106 : vector<8x128xf32>
    %109 = arith.maximumf %106, %108 : vector<8x128xf32>
    %c0_59 = arith.constant 0 : index
    %c0_60 = arith.constant 0 : index
    %110 = vector.load %arg18[%c0_59, %c0_60] : memref<1x128xf32, #tpu.memory_space<vmem>>, vector<1x128xf32>
    %c0_61 = arith.constant 0 : index
    %c0_62 = arith.constant 0 : index
    %111 = vector.load %arg19[%c0_61, %c0_62] : memref<1x128xf32, #tpu.memory_space<vmem>>, vector<1x128xf32>
    %cst_63 = arith.constant dense<0.000000e+00> : vector<128xf32>
    %112 = vector.multi_reduction <add>, %109, %cst_63 [0] : vector<8x128xf32> to vector<128xf32>
    %113 = vector.shape_cast %112 : vector<128xf32> to vector<1x128xf32>
    %cst_64 = arith.constant 8.000000e+00 : f32
    %114 = vector.broadcast %cst_64 : f32 to vector<1x128xf32>
    %115 = arith.divf %113, %114 : vector<1x128xf32>
    %116 = vector.broadcast %115 : vector<1x128xf32> to vector<8x128xf32>
    %117 = arith.subf %109, %116 : vector<8x128xf32>
    %118 = arith.mulf %117, %117 : vector<8x128xf32>
    %cst_65 = arith.constant dense<0.000000e+00> : vector<128xf32>
    %119 = vector.multi_reduction <add>, %118, %cst_65 [0] : vector<8x128xf32> to vector<128xf32>
    %120 = vector.shape_cast %119 : vector<128xf32> to vector<1x128xf32>
    %cst_66 = arith.constant 8.000000e+00 : f32
    %121 = vector.broadcast %cst_66 : f32 to vector<1x128xf32>
    %122 = arith.divf %120, %121 : vector<1x128xf32>
    %cst_67 = arith.constant 9.99999974E-6 : f32
    %123 = vector.broadcast %cst_67 : f32 to vector<1x128xf32>
    %124 = arith.addf %122, %123 : vector<1x128xf32>
    %125 = math.rsqrt %124 : vector<1x128xf32>
    %126 = vector.broadcast %125 : vector<1x128xf32> to vector<8x128xf32>
    %127 = arith.mulf %117, %126 : vector<8x128xf32>
    %128 = vector.broadcast %110 : vector<1x128xf32> to vector<8x128xf32>
    %129 = arith.mulf %127, %128 : vector<8x128xf32>
    %130 = vector.broadcast %111 : vector<1x128xf32> to vector<8x128xf32>
    %131 = arith.addf %129, %130 : vector<8x128xf32>
    %c0_68 = arith.constant 0 : index
    %c0_69 = arith.constant 0 : index
    %132 = vector.load %arg20[%c0_68, %c0_69] : memref<128x128xbf16, #tpu.memory_space<vmem>>, vector<128x128xbf16>
    %c0_70 = arith.constant 0 : index
    %c0_71 = arith.constant 0 : index
    %133 = vector.load %arg21[%c0_70, %c0_71] : memref<1x128xf32, #tpu.memory_space<vmem>>, vector<1x128xf32>
    %134 = arith.truncf %131 : vector<8x128xf32> to vector<8x128xbf16>
    %cst_72 = arith.constant dense<0.000000e+00> : vector<8x128xf32>
    %135 = tpu.matmul %134, %132, %cst_72 {dimension_numbers = #tpu.dot_dimension_numbers<[1], [0], [0], [1], [0, 0, 1, 1], [], []>} : vector<8x128xbf16>, vector<128x128xbf16>, vector<8x128xf32> -> vector<8x128xf32>
    %136 = vector.broadcast %133 : vector<1x128xf32> to vector<8x128xf32>
    %137 = arith.addf %135, %136 : vector<8x128xf32>
    %cst_73 = arith.constant 0.00999999977 : f32
    %138 = vector.broadcast %cst_73 : f32 to vector<8x128xf32>
    %139 = arith.mulf %138, %137 : vector<8x128xf32>
    %140 = arith.maximumf %137, %139 : vector<8x128xf32>
    %c0_74 = arith.constant 0 : index
    %c0_75 = arith.constant 0 : index
    %141 = vector.load %arg22[%c0_74, %c0_75] : memref<1x128xf32, #tpu.memory_space<vmem>>, vector<1x128xf32>
    %c0_76 = arith.constant 0 : index
    %c0_77 = arith.constant 0 : index
    %142 = vector.load %arg23[%c0_76, %c0_77] : memref<1x128xf32, #tpu.memory_space<vmem>>, vector<1x128xf32>
    %cst_78 = arith.constant dense<0.000000e+00> : vector<128xf32>
    %143 = vector.multi_reduction <add>, %140, %cst_78 [0] : vector<8x128xf32> to vector<128xf32>
    %144 = vector.shape_cast %143 : vector<128xf32> to vector<1x128xf32>
    %cst_79 = arith.constant 8.000000e+00 : f32
    %145 = vector.broadcast %cst_79 : f32 to vector<1x128xf32>
    %146 = arith.divf %144, %145 : vector<1x128xf32>
    %147 = vector.broadcast %146 : vector<1x128xf32> to vector<8x128xf32>
    %148 = arith.subf %140, %147 : vector<8x128xf32>
    %149 = arith.mulf %148, %148 : vector<8x128xf32>
    %cst_80 = arith.constant dense<0.000000e+00> : vector<128xf32>
    %150 = vector.multi_reduction <add>, %149, %cst_80 [0] : vector<8x128xf32> to vector<128xf32>
    %151 = vector.shape_cast %150 : vector<128xf32> to vector<1x128xf32>
    %cst_81 = arith.constant 8.000000e+00 : f32
    %152 = vector.broadcast %cst_81 : f32 to vector<1x128xf32>
    %153 = arith.divf %151, %152 : vector<1x128xf32>
    %cst_82 = arith.constant 9.99999974E-6 : f32
    %154 = vector.broadcast %cst_82 : f32 to vector<1x128xf32>
    %155 = arith.addf %153, %154 : vector<1x128xf32>
    %156 = math.rsqrt %155 : vector<1x128xf32>
    %157 = vector.broadcast %156 : vector<1x128xf32> to vector<8x128xf32>
    %158 = arith.mulf %148, %157 : vector<8x128xf32>
    %159 = vector.broadcast %141 : vector<1x128xf32> to vector<8x128xf32>
    %160 = arith.mulf %158, %159 : vector<8x128xf32>
    %161 = vector.broadcast %142 : vector<1x128xf32> to vector<8x128xf32>
    %162 = arith.addf %160, %161 : vector<8x128xf32>
    %c0_83 = arith.constant 0 : index
    %c0_84 = arith.constant 0 : index
    %163 = vector.load %arg24[%c0_83, %c0_84] : memref<128x128xbf16, #tpu.memory_space<vmem>>, vector<128x128xbf16>
    %c0_85 = arith.constant 0 : index
    %c0_86 = arith.constant 0 : index
    %164 = vector.load %arg25[%c0_85, %c0_86] : memref<1x128xf32, #tpu.memory_space<vmem>>, vector<1x128xf32>
    %165 = arith.truncf %162 : vector<8x128xf32> to vector<8x128xbf16>
    %cst_87 = arith.constant dense<0.000000e+00> : vector<8x128xf32>
    %166 = tpu.matmul %165, %163, %cst_87 {dimension_numbers = #tpu.dot_dimension_numbers<[1], [0], [0], [1], [0, 0, 1, 1], [], []>} : vector<8x128xbf16>, vector<128x128xbf16>, vector<8x128xf32> -> vector<8x128xf32>
    %167 = vector.broadcast %164 : vector<1x128xf32> to vector<8x128xf32>
    %168 = arith.addf %166, %167 : vector<8x128xf32>
    %169 = vector.extract_strided_slice %6 {offsets = [0, 0], sizes = [8, 128], strides = [1, 1]} : vector<8x256xf32> to vector<8x128xf32>
    %170 = tpu.iota {dimensions = array<i32: 1>} : vector<8x128xi32>
    %c32_i32 = arith.constant 32 : i32
    %171 = vector.broadcast %c32_i32 : i32 to vector<8x128xi32>
    %172 = arith.cmpi sge, %170, %171 : vector<8x128xi32>
    %cst_88 = arith.constant 0.000000e+00 : f32
    %173 = vector.broadcast %cst_88 : f32 to vector<8x128xf32>
    %174 = arith.select %172, %169, %173 : vector<8x128xi1>, vector<8x128xf32>
    %175 = arith.addf %168, %174 : vector<8x128xf32>
    %176 = vector.extract_strided_slice %6 {offsets = [0, 128], sizes = [8, 128], strides = [1, 1]} : vector<8x256xf32> to vector<8x128xf32>
    %177 = tpu.concatenate %175, %176 in 1 : vector<8x128xf32>, vector<8x128xf32> -> vector<8x256xf32>
    %cst_89 = arith.constant dense<0.000000e+00> : vector<8x256xf32>
    %178 = tpu.matmul %177, %1, %cst_89 {dimension_numbers = #tpu.dot_dimension_numbers<[1], [0], [0], [1], [0, 0, 1, 1], [], []>} : vector<8x256xf32>, vector<256x256xf32>, vector<8x256xf32> -> vector<8x256xf32>
    %179 = vector.broadcast %0 : vector<1x256xf32> to vector<8x256xf32>
    %180 = arith.addf %178, %179 : vector<8x256xf32>
    %c0_90 = arith.constant 0 : index
    %c0_91 = arith.constant 0 : index
    %c0_92 = arith.constant 0 : index
    %181 = vector.load %arg26[%c0_90, %c0_91, %c0_92] : memref<1x8x256xf32, #tpu.memory_space<vmem>>, vector<1x8x256xf32>
    %182 = vector.shape_cast %181 : vector<1x8x256xf32> to vector<8x256xf32>
    %183 = vector.shape_cast %180 : vector<8x256xf32> to vector<1x8x256xf32>
    tpu.vector_store %arg26[%c0_90, %c0_91, %c0_92], %183 {strides = array<i32>} : memref<1x8x256xf32, #tpu.memory_space<vmem>>, vector<1x8x256xf32>,
    return
  }
  func.func @transform_0(%arg0: i32) -> (i32, i32, i32) {
    %c0_i32 = arith.constant 0 : i32
    %c0_i32_0 = arith.constant 0 : i32
    %c0_i32_1 = arith.constant 0 : i32
    return %arg0, %c0_i32, %c0_i32_0 : i32, i32, i32
  }
  func.func @transform_1(%arg0: i32) -> (i32, i32) {
    %c0_i32 = arith.constant 0 : i32
    %c0_i32_0 = arith.constant 0 : i32
    %c0_i32_1 = arith.constant 0 : i32
    return %c0_i32, %c0_i32_0 : i32, i32
  }
  func.func @transform_2(%arg0: i32) -> (i32, i32) {
    %c0_i32 = arith.constant 0 : i32
    %c0_i32_0 = arith.constant 0 : i32
    %c0_i32_1 = arith.constant 0 : i32
    return %c0_i32, %c0_i32_0 : i32, i32
  }
  func.func @transform_3(%arg0: i32) -> (i32, i32) {
    %c0_i32 = arith.constant 0 : i32
    %c0_i32_0 = arith.constant 0 : i32
    %c0_i32_1 = arith.constant 0 : i32
    return %c0_i32, %c0_i32_0 : i32, i32
  }
  func.func @transform_4(%arg0: i32) -> (i32, i32) {
    %c0_i32 = arith.constant 0 : i32
    %c0_i32_0 = arith.constant 0 : i32
    %c0_i32_1 = arith.constant 0 : i32
    return %c0_i32, %c0_i32_0 : i32, i32
  }
  func.func @transform_5(%arg0: i32) -> (i32, i32) {
    %c0_i32 = arith.constant 0 : i32
    %c0_i32_0 = arith.constant 0 : i32
    %c0_i32_1 = arith.constant 0 : i32
    return %c0_i32, %c0_i32_0 : i32, i32
  }
  func.func @transform_6(%arg0: i32) -> (i32, i32) {
    %c0_i32 = arith.constant 0 : i32
    %c0_i32_0 = arith.constant 0 : i32
    %c0_i32_1 = arith.constant 0 : i32
    return %c0_i32, %c0_i32_0 : i32, i32
  }
  func.func @transform_7(%arg0: i32) -> (i32, i32) {
    %c0_i32 = arith.constant 0 : i32
    %c0_i32_0 = arith.constant 0 : i32
    %c0_i32_1 = arith.constant 0 : i32
    return %c0_i32, %c0_i32_0 : i32, i32
  }
  func.func @transform_8(%arg0: i32) -> (i32, i32) {
    %c0_i32 = arith.constant 0 : i32
    %c0_i32_0 = arith.constant 0 : i32
    %c0_i32_1 = arith.constant 0 : i32
    return %c0_i32, %c0_i32_0 : i32, i32
  }
  func.func @transform_9(%arg0: i32) -> (i32, i32) {
    %c0_i32 = arith.constant 0 : i32
    %c0_i32_0 = arith.constant 0 : i32
    %c0_i32_1 = arith.constant 0 : i32
    return %c0_i32, %c0_i32_0 : i32, i32
  }
  func.func @transform_10(%arg0: i32) -> (i32, i32) {
    %c0_i32 = arith.constant 0 : i32
    %c0_i32_0 = arith.constant 0 : i32
    %c0_i32_1 = arith.constant 0 : i32
    return %c0_i32, %c0_i32_0 : i32, i32
  }
  func.func @transform_11(%arg0: i32) -> (i32, i32) {
    %c0_i32 = arith.constant 0 : i32
    %c0_i32_0 = arith.constant 0 : i32
    %c0_i32_1 = arith.constant 0 : i32
    return %c0_i32, %c0_i32_0 : i32, i32
  }
  func.func @transform_12(%arg0: i32) -> (i32, i32) {
    %c0_i32 = arith.constant 0 : i32
    %c0_i32_0 = arith.constant 0 : i32
    %c0_i32_1 = arith.constant 0 : i32
    return %c0_i32, %c0_i32_0 : i32, i32
  }
  func.func @transform_13(%arg0: i32) -> (i32, i32) {
    %c0_i32 = arith.constant 0 : i32
    %c0_i32_0 = arith.constant 0 : i32
    %c0_i32_1 = arith.constant 0 : i32
    return %c0_i32, %c0_i32_0 : i32, i32
  }
  func.func @transform_14(%arg0: i32) -> (i32, i32) {
    %c0_i32 = arith.constant 0 : i32
    %c0_i32_0 = arith.constant 0 : i32
    %c0_i32_1 = arith.constant 0 : i32
    return %c0_i32, %c0_i32_0 : i32, i32
  }
  func.func @transform_15(%arg0: i32) -> (i32, i32) {
    %c0_i32 = arith.constant 0 : i32
    %c0_i32_0 = arith.constant 0 : i32
    %c0_i32_1 = arith.constant 0 : i32
    return %c0_i32, %c0_i32_0 : i32, i32
  }
  func.func @transform_16(%arg0: i32) -> (i32, i32) {
    %c0_i32 = arith.constant 0 : i32
    %c0_i32_0 = arith.constant 0 : i32
    %c0_i32_1 = arith.constant 0 : i32
    return %c0_i32, %c0_i32_0 : i32, i32
  }
  func.func @transform_17(%arg0: i32) -> (i32, i32) {
    %c0_i32 = arith.constant 0 : i32
    %c0_i32_0 = arith.constant 0 : i32
    %c0_i32_1 = arith.constant 0 : i32
    return %c0_i32, %c0_i32_0 : i32, i32
  }
  func.func @transform_18(%arg0: i32) -> (i32, i32) {
    %c0_i32 = arith.constant 0 : i32
    %c0_i32_0 = arith.constant 0 : i32
    %c0_i32_1 = arith.constant 0 : i32
    return %c0_i32, %c0_i32_0 : i32, i32
  }
  func.func @transform_19(%arg0: i32) -> (i32, i32) {
    %c0_i32 = arith.constant 0 : i32
    %c0_i32_0 = arith.constant 0 : i32
    %c0_i32_1 = arith.constant 0 : i32
    return %c0_i32, %c0_i32_0 : i32, i32
  }
  func.func @transform_20(%arg0: i32) -> (i32, i32) {
    %c0_i32 = arith.constant 0 : i32
    %c0_i32_0 = arith.constant 0 : i32
    %c0_i32_1 = arith.constant 0 : i32
    return %c0_i32, %c0_i32_0 : i32, i32
  }
  func.func @transform_21(%arg0: i32) -> (i32, i32) {
    %c0_i32 = arith.constant 0 : i32
    %c0_i32_0 = arith.constant 0 : i32
    %c0_i32_1 = arith.constant 0 : i32
    return %c0_i32, %c0_i32_0 : i32, i32
  }
  func.func @transform_22(%arg0: i32) -> (i32, i32) {
    %c0_i32 = arith.constant 0 : i32
    %c0_i32_0 = arith.constant 0 : i32
    %c0_i32_1 = arith.constant 0 : i32
    return %c0_i32, %c0_i32_0 : i32, i32
  }
  func.func @transform_23(%arg0: i32) -> (i32, i32) {
    %c0_i32 = arith.constant 0 : i32
    %c0_i32_0 = arith.constant 0 : i32
    %c0_i32_1 = arith.constant 0 : i32
    return %c0_i32, %c0_i32_0 : i32, i32
  }
  func.func @transform_24(%arg0: i32) -> (i32, i32) {
    %c0_i32 = arith.constant 0 : i32
    %c0_i32_0 = arith.constant 0 : i32
    %c0_i32_1 = arith.constant 0 : i32
    return %c0_i32, %c0_i32_0 : i32, i32
  }
  func.func @transform_25(%arg0: i32) -> (i32, i32, i32) {
    %c0_i32 = arith.constant 0 : i32
    %c0_i32_0 = arith.constant 0 : i32
    %c0_i32_1 = arith.constant 0 : i32
    return %arg0, %c0_i32, %c0_i32_0 : i32, i32, i32
  }
  func.func @transform_26(%arg0: i32) -> (i32, i32, i32) {
    %c0_i32 = arith.constant 0 : i32
    %c0_i32_0 = arith.constant 0 : i32
    %c0_i32_1 = arith.constant 0 : i32
    return %arg0, %c0_i32, %c0_i32_0 : i32, i32, i32
  }
}

</mosaic_0001>

<llo_original>
// kernel: tpu_custom_call.1
$region0: #{tpu_custom_call.1}
  #allocation0 [shape = 'u32[]', space=smem, size = 0x4, offset = 0x4, fixed_abs, tag = 'smem constant byte address 0x4 - core index']
  #allocation1 [shape = 'u32[144,128]{1,0:T(1,128)}', space=vmem, size = 0x12000, scoped, tag = 'internal scratch']
  %s0 = inlined_call_operand.hbm [shape: f32[4,8,256], index: 0, kind: input, shape index: {}]
  %s1 = inlined_call_operand.hbm [shape: f32[1,256], index: 1, kind: input, shape index: {}]
  %s2 = inlined_call_operand.hbm [shape: f32[256,256], index: 2, kind: input, shape index: {}]
  %s3 = inlined_call_operand.hbm [shape: bf16[128,128], index: 3, kind: input, shape index: {}]
  %s4 = inlined_call_operand.vmem [shape: f32[1,128], index: 4, kind: input, shape index: {}]
  %s5 = inlined_call_operand.vmem [shape: f32[1,128], index: 5, kind: input, shape index: {}]
  %s6 = inlined_call_operand.vmem [shape: f32[1,128], index: 6, kind: input, shape index: {}]
  %s7 = inlined_call_operand.hbm [shape: bf16[128,128], index: 7, kind: input, shape index: {}]
  %s8 = inlined_call_operand.vmem [shape: f32[1,128], index: 8, kind: input, shape index: {}]
  %s9 = inlined_call_operand.vmem [shape: f32[1,128], index: 9, kind: input, shape index: {}]
  %s10 = inlined_call_operand.vmem [shape: f32[1,128], index: 10, kind: input, shape index: {}]
  %s11 = inlined_call_operand.hbm [shape: bf16[128,128], index: 11, kind: input, shape index: {}]
  %s12 = inlined_call_operand.vmem [shape: f32[1,128], index: 12, kind: input, shape index: {}]
  %s13 = inlined_call_operand.vmem [shape: f32[1,128], index: 13, kind: input, shape index: {}]
  %s14 = inlined_call_operand.vmem [shape: f32[1,128], index: 14, kind: input, shape index: {}]
  %s15 = inlined_call_operand.hbm [shape: bf16[128,128], index: 15, kind: input, shape index: {}]
  %s16 = inlined_call_operand.vmem [shape: f32[1,128], index: 16, kind: input, shape index: {}]
  %s17 = inlined_call_operand.vmem [shape: f32[1,128], index: 17, kind: input, shape index: {}]
  %s18 = inlined_call_operand.vmem [shape: f32[1,128], index: 18, kind: input, shape index: {}]
  %s19 = inlined_call_operand.hbm [shape: bf16[128,128], index: 19, kind: input, shape index: {}]
  %s20 = inlined_call_operand.vmem [shape: f32[1,128], index: 20, kind: input, shape index: {}]
  %s21 = inlined_call_operand.vmem [shape: f32[1,128], index: 21, kind: input, shape index: {}]
  %s22 = inlined_call_operand.vmem [shape: f32[1,128], index: 22, kind: input, shape index: {}]
  %s23 = inlined_call_operand.hbm [shape: bf16[128,128], index: 23, kind: input, shape index: {}]
  %s24 = inlined_call_operand.vmem [shape: f32[1,128], index: 24, kind: input, shape index: {}]
  %s25 = inlined_call_operand.hbm [shape: f32[4,8,256], index: 25, kind: output, shape index: {0}]
  %s26 = inlined_call_operand.hbm [shape: f32[4,8,128], index: 26, kind: output, shape index: {1}]
  %27 = xla_tuple %s25, %s26
  %s28 = sld [smem:[#allocation0]]
  $region177: #{tpu_custom_call.1} parent=0
    _
  %s30 = ssub.s32 1, %s28
  %s31 = scalar_select 0, %s30, %s28
  $region1: #{tpu_custom_call.1} parent=0
    #allocation2 [shape = 'u8[16384]{0}', space=vmem, size = 0x4000, scoped, tag = 'input window, operand 0']
    #allocation3 [shape = 's32[2]{0}', space=sflag, size = 0x8, scoped, tag = 'scoped memory for tpu_custom_call.1']
    #allocation4 [shape = 's32[2]{0}', space=sflag, size = 0x8, scoped, tag = 'scoped memory for tpu_custom_call.1']
    #allocation5 [shape = 'u8[1024]{0}', space=vmem, size = 0x400, scoped, tag = 'input window, operand 1, single buffered']
    #allocation6 [shape = 's32[1]{0}', space=sflag, size = 0x4, scoped, tag = 'scoped memory for tpu_custom_call.1']
    #allocation7 [shape = 'u8[262144]{0}', space=vmem, size = 0x40000, scoped, tag = 'input window, operand 2, single buffered']
    #allocation8 [shape = 'u8[32768]{0}', space=vmem, size = 0x8000, scoped, tag = 'input window, operand 3, single buffered']
    #allocation9 [shape = 's32[1]{0}', space=sflag, size = 0x4, scoped, tag = 'scoped memory for tpu_custom_call.1']
    #allocation10 [shape = 'u8[32768]{0}', space=vmem, size = 0x8000, scoped, tag = 'input window, operand 7, single buffered']
    #allocation11 [shape = 'u8[32768]{0}', space=vmem, size = 0x8000, scoped, tag = 'input window, operand 11, single buffered']
    #allocation12 [shape = 's32[1]{0}', space=sflag, size = 0x4, scoped, tag = 'scoped memory for tpu_custom_call.1']
    #allocation13 [shape = 'u8[32768]{0}', space=vmem, size = 0x8000, scoped, tag = 'input window, operand 15, single buffered']
    #allocation14 [shape = 'u8[32768]{0}', space=vmem, size = 0x8000, scoped, tag = 'input window, operand 19, single buffered']
    #allocation15 [shape = 's32[1]{0}', space=sflag, size = 0x4, scoped, tag = 'scoped memory for tpu_custom_call.1']
    #allocation16 [shape = 'u8[32768]{0}', space=vmem, size = 0x8000, scoped, tag = 'input window, operand 23, single buffered']
    #allocation17 [shape = 'u8[16384]{0}', space=vmem, size = 0x4000, scoped, tag = 'output window, operand 0']
    #allocation18 [shape = 'u8[8192]{0}', space=vmem, size = 0x2000, scoped, tag = 'output window, operand 1']
    #allocation19 [shape = 's32[2]{0}', space=sflag, size = 0x8, scoped, tag = 'scoped memory for tpu_custom_call.1']
    %32 = vsyncpa [#allocation3], 0
    %s33 = scalar_lea.sflag [#allocation3], 1
    %34 = vsyncpa %s33, 0
    %35 = vsyncpa [#allocation6], 0
    %36 = vsyncpa [#allocation9], 0
    %37 = vsyncpa [#allocation12], 0
    %38 = vsyncpa [#allocation15], 0
    %39 = vsyncpa [#allocation4], 0
    %s40 = scalar_lea.sflag [#allocation4], 1
    %41 = vsyncpa %s40, 0
    %42 = vsyncpa [#allocation19], 0
    %s43 = scalar_lea.sflag [#allocation19], 1
    %44 = vsyncpa %s43, 0
    loop: start=0, step=1, limit=6
    $region2: #{tpu_custom_call.1} parent=1 // loop_pre_header
      _
    $region3: #{tpu_custom_call.1} parent=1 // loop_header
      %s46 = sphi 0, %s50
      %p47 = scmp.ge.s32.totalorder %s46, 6
      %s56 = sphi 0, %s58
      %s59 = sphi 0, %s56
      %s60 = sphi 0, %s59
      %s76 = sphi 0, %s60
      %s80 = sphi 0, %s80
      %s82 = sphi 0, %s80
      %s83 = sphi 0, %s82
      %s97 = sphi 0, %s83
      %s101 = sphi 0, %s101
      %s103 = sphi 0, %s101
      %s104 = sphi 0, %s103
      %s118 = sphi 0, %s104
      %s122 = sphi 0, %s122
      %s124 = sphi 0, %s122
      %s125 = sphi 0, %s124
      %s139 = sphi 0, %s125
      %s143 = sphi 0, %s143
      %s145 = sphi 0, %s143
      %s146 = sphi 0, %s145
      %s160 = sphi 0, %s146
      %s164 = sphi 0, %s164
      %s166 = sphi 0, %s164
      %s167 = sphi 0, %s166
      %s181 = sphi 0, %s167
      %s185 = sphi 0, %s185
      %s187 = sphi 0, %s185
      %s188 = sphi 0, %s187
      %s202 = sphi 0, %s188
      %s206 = sphi 0, %s206
      %s208 = sphi 0, %s206
      %s209 = sphi 0, %s208
      %s223 = sphi 0, %s209
      %s227 = sphi 0, %s227
      %s229 = sphi 0, %s227
      %s230 = sphi 0, %s229
      %s244 = sphi 0, %s230
      %s248 = sphi 0, %s248
      %s250 = sphi 0, %s248
      %s251 = sphi 0, %s250
      %s265 = sphi 0, %s251
      %s269 = sphi 0, %s269
      %s271 = sphi 0, %s269
      %s272 = sphi 0, %s271
      %s286 = sphi 0, %s272
      %s290 = sphi 0, %s290
      %s292 = sphi 0, %s290
      %s293 = sphi 0, %s292
      %s307 = sphi 0, %s293
      %s311 = sphi 0, %s311
      %s313 = sphi 0, %s311
      %s314 = sphi 0, %s313
      %s328 = sphi 0, %s314
      %s332 = sphi 0, %s332
      %s334 = sphi 0, %s332
      %s335 = sphi 0, %s334
      %s349 = sphi 0, %s335
      %s353 = sphi 0, %s353
      %s355 = sphi 0, %s353
      %s356 = sphi 0, %s355
      %s370 = sphi 0, %s356
      %s374 = sphi 0, %s374
      %s376 = sphi 0, %s374
      %s377 = sphi 0, %s376
      %s391 = sphi 0, %s377
      %s395 = sphi 0, %s395
      %s397 = sphi 0, %s395
      %s398 = sphi 0, %s397
      %s412 = sphi 0, %s398
      %s416 = sphi 0, %s416
      %s418 = sphi 0, %s416
      %s419 = sphi 0, %s418
      %s433 = sphi 0, %s419
      %s437 = sphi 0, %s437
      %s439 = sphi 0, %s437
      %s440 = sphi 0, %s439
      %s454 = sphi 0, %s440
      %s458 = sphi 0, %s458
      %s460 = sphi 0, %s458
      %s461 = sphi 0, %s460
      %s475 = sphi 0, %s461
      %s479 = sphi 0, %s479
      %s481 = sphi 0, %s479
      %s482 = sphi 0, %s481
      %s496 = sphi 0, %s482
      %s500 = sphi 0, %s500
      %s502 = sphi 0, %s500
      %s503 = sphi 0, %s502
      %s517 = sphi 0, %s503
      %s521 = sphi 0, %s521
      %s523 = sphi 0, %s521
      %s524 = sphi 0, %s523
      %s538 = sphi 0, %s524
      %s542 = sphi 0, %s542
      %s544 = sphi 0, %s542
      %s545 = sphi 0, %s544
      %s559 = sphi 0, %s545
      %s563 = sphi 0, %s563
      %s565 = sphi 0, %s563
      %s566 = sphi 0, %s565
      %s580 = sphi 0, %s566
      %s586 = sphi 0, %s588
      %s589 = sphi 0, %s586
      %s590 = sphi 0, %s589
      %s606 = sphi 0, %s590
      %s612 = sphi 0, %s614
      %s615 = sphi 0, %s612
      %s616 = sphi 0, %s615
      %s632 = sphi 0, %s616
    $region4: #{tpu_custom_call.1} parent=1 // loop_header_branch
      %49 = sbr.rel (%p47) target = $region8
    $region5: #{tpu_custom_call.1} parent=1 // loop_body
      %s51 = ssub.s32 %s46, 1
      %s52 = ssub.s32 %s46, 2
      %s53 = sadd.s32 %s46, 1
      %s54 = ssub.s32 %s46, %s53
      %p55 = scmp.eq.s32.totalorder %s54, 0
      %s57 = sadd.s32 %s56, 1
      %s58 = scalar_select %p55, %s56, %s57
      %p61 = pneg %p55
      %p62 = scmp.eq.s32.totalorder %s46, 3
      %p63 = por %p61, %p62
      %p64 = scmp.ne.s32.totalorder %s56, %s59
      %p65 = scmp.eq.s32.totalorder %s46, 0
      %p66 = por %p64, %p65
      %p67 = scmp.ne.s32.totalorder %s56, %s59
      %p68 = scmp.eq.s32.totalorder %s51, 3
      %p69 = por %p67, %p68
      %p70 = scmp.ne.s32.totalorder %s59, %s60
      %p71 = scmp.eq.s32.totalorder %s51, 0
      %p72 = por %p70, %p71
      %p73 = scmp.ne.s32.totalorder %s59, %s60
      %p74 = scmp.eq.s32.totalorder %s52, 3
      %p75 = por %p73, %p74
      %p77 = scmp.ne.s32.totalorder %s60, %s76
      %p78 = scmp.eq.s32.totalorder %s52, 0
      %p79 = por %p77, %p78
      %s81 = sadd.s32 %s80, 1
      %p84 = scmp.eq.s32.totalorder %s46, 3
      %p85 = scmp.ne.s32.totalorder %s80, %s82
      %p86 = scmp.eq.s32.totalorder %s46, 0
      %p87 = por %p85, %p86
      %p88 = scmp.ne.s32.totalorder %s80, %s82
      %p89 = scmp.eq.s32.totalorder %s51, 3
      %p90 = por %p88, %p89
      %p91 = scmp.ne.s32.totalorder %s82, %s83
      %p92 = scmp.eq.s32.totalorder %s51, 0
      %p93 = por %p91, %p92
      %p94 = scmp.ne.s32.totalorder %s82, %s83
      %p95 = scmp.eq.s32.totalorder %s52, 3
      %p96 = por %p94, %p95
      %p98 = scmp.ne.s32.totalorder %s83, %s97
      %p99 = scmp.eq.s32.totalorder %s52, 0
      %p100 = por %p98, %p99
      %s102 = sadd.s32 %s101, 1
      %p105 = scmp.eq.s32.totalorder %s46, 3
      %p106 = scmp.ne.s32.totalorder %s101, %s103
      %p107 = scmp.eq.s32.totalorder %s46, 0
      %p108 = por %p106, %p107
      %p109 = scmp.ne.s32.totalorder %s101, %s103
      %p110 = scmp.eq.s32.totalorder %s51, 3
      %p111 = por %p109, %p110
      %p112 = scmp.ne.s32.totalorder %s103, %s104
      %p113 = scmp.eq.s32.totalorder %s51, 0
      %p114 = por %p112, %p113
      %p115 = scmp.ne.s32.totalorder %s103, %s104
      %p116 = scmp.eq.s32.totalorder %s52, 3
      %p117 = por %p115, %p116
      %p119 = scmp.ne.s32.totalorder %s104, %s118
      %p120 = scmp.eq.s32.totalorder %s52, 0
      %p121 = por %p119, %p120
      %s123 = sadd.s32 %s122, 1
      %p126 = scmp.eq.s32.totalorder %s46, 3
      %p127 = scmp.ne.s32.totalorder %s122, %s124
      %p128 = scmp.eq.s32.totalorder %s46, 0
      %p129 = por %p127, %p128
      %p130 = scmp.ne.s32.totalorder %s122, %s124
      %p131 = scmp.eq.s32.totalorder %s51, 3
      %p132 = por %p130, %p131
      %p133 = scmp.ne.s32.totalorder %s124, %s125
      %p134 = scmp.eq.s32.totalorder %s51, 0
      %p135 = por %p133, %p134
      %p136 = scmp.ne.s32.totalorder %s124, %s125
      %p137 = scmp.eq.s32.totalorder %s52, 3
      %p138 = por %p136, %p137
      %p140 = scmp.ne.s32.totalorder %s125, %s139
      %p141 = scmp.eq.s32.totalorder %s52, 0
      %p142 = por %p140, %p141
      %s144 = sadd.s32 %s143, 1
      %p147 = scmp.eq.s32.totalorder %s46, 3
      %p148 = scmp.ne.s32.totalorder %s143, %s145
      %p149 = scmp.eq.s32.totalorder %s46, 0
      %p150 = por %p148, %p149
      %p151 = scmp.ne.s32.totalorder %s143, %s145
      %p152 = scmp.eq.s32.totalorder %s51, 3
      %p153 = por %p151, %p152
      %p154 = scmp.ne.s32.totalorder %s145, %s146
      %p155 = scmp.eq.s32.totalorder %s51, 0
      %p156 = por %p154, %p155
      %p157 = scmp.ne.s32.totalorder %s145, %s146
      %p158 = scmp.eq.s32.totalorder %s52, 3
      %p159 = por %p157, %p158
      %p161 = scmp.ne.s32.totalorder %s146, %s160
      %p162 = scmp.eq.s32.totalorder %s52, 0
      %p163 = por %p161, %p162
      %s165 = sadd.s32 %s164, 1
      %p168 = scmp.eq.s32.totalorder %s46, 3
      %p169 = scmp.ne.s32.totalorder %s164, %s166
      %p170 = scmp.eq.s32.totalorder %s46, 0
      %p171 = por %p169, %p170
      %p172 = scmp.ne.s32.totalorder %s164, %s166
      %p173 = scmp.eq.s32.totalorder %s51, 3
      %p174 = por %p172, %p173
      %p175 = scmp.ne.s32.totalorder %s166, %s167
      %p176 = scmp.eq.s32.totalorder %s51, 0
      %p177 = por %p175, %p176
      %p178 = scmp.ne.s32.totalorder %s166, %s167
      %p179 = scmp.eq.s32.totalorder %s52, 3
      %p180 = por %p178, %p179
      %p182 = scmp.ne.s32.totalorder %s167, %s181
      %p183 = scmp.eq.s32.totalorder %s52, 0
      %p184 = por %p182, %p183
      %s186 = sadd.s32 %s185, 1
      %p189 = scmp.eq.s32.totalorder %s46, 3
      %p190 = scmp.ne.s32.totalorder %s185, %s187
      %p191 = scmp.eq.s32.totalorder %s46, 0
      %p192 = por %p190, %p191
      %p193 = scmp.ne.s32.totalorder %s185, %s187
      %p194 = scmp.eq.s32.totalorder %s51, 3
      %p195 = por %p193, %p194
      %p196 = scmp.ne.s32.totalorder %s187, %s188
      %p197 = scmp.eq.s32.totalorder %s51, 0
      %p198 = por %p196, %p197
      %p199 = scmp.ne.s32.totalorder %s187, %s188
      %p200 = scmp.eq.s32.totalorder %s52, 3
      %p201 = por %p199, %p200
      %p203 = scmp.ne.s32.totalorder %s188, %s202
      %p204 = scmp.eq.s32.totalorder %s52, 0
      %p205 = por %p203, %p204
      %s207 = sadd.s32 %s206, 1
      %p210 = scmp.eq.s32.totalorder %s46, 3
      %p211 = scmp.ne.s32.totalorder %s206, %s208
      %p212 = scmp.eq.s32.totalorder %s46, 0
      %p213 = por %p211, %p212
      %p214 = scmp.ne.s32.totalorder %s206, %s208
      %p215 = scmp.eq.s32.totalorder %s51, 3
      %p216 = por %p214, %p215
      %p217 = scmp.ne.s32.totalorder %s208, %s209
      %p218 = scmp.eq.s32.totalorder %s51, 0
      %p219 = por %p217, %p218
      %p220 = scmp.ne.s32.totalorder %s208, %s209
      %p221 = scmp.eq.s32.totalorder %s52, 3
      %p222 = por %p220, %p221
      %p224 = scmp.ne.s32.totalorder %s209, %s223
      %p225 = scmp.eq.s32.totalorder %s52, 0
      %p226 = por %p224, %p225
      %s228 = sadd.s32 %s227, 1
      %p231 = scmp.eq.s32.totalorder %s46, 3
      %p232 = scmp.ne.s32.totalorder %s227, %s229
      %p233 = scmp.eq.s32.totalorder %s46, 0
      %p234 = por %p232, %p233
      %p235 = scmp.ne.s32.totalorder %s227, %s229
      %p236 = scmp.eq.s32.totalorder %s51, 3
      %p237 = por %p235, %p236
      %p238 = scmp.ne.s32.totalorder %s229, %s230
      %p239 = scmp.eq.s32.totalorder %s51, 0
      %p240 = por %p238, %p239
      %p241 = scmp.ne.s32.totalorder %s229, %s230
      %p242 = scmp.eq.s32.totalorder %s52, 3
      %p243 = por %p241, %p242
      %p245 = scmp.ne.s32.totalorder %s230, %s244
      %p246 = scmp.eq.s32.totalorder %s52, 0
      %p247 = por %p245, %p246
      %s249 = sadd.s32 %s248, 1
      %p252 = scmp.eq.s32.totalorder %s46, 3
      %p253 = scmp.ne.s32.totalorder %s248, %s250
      %p254 = scmp.eq.s32.totalorder %s46, 0
      %p255 = por %p253, %p254
      %p256 = scmp.ne.s32.totalorder %s248, %s250
      %p257 = scmp.eq.s32.totalorder %s51, 3
      %p258 = por %p256, %p257
      %p259 = scmp.ne.s32.totalorder %s250, %s251
      %p260 = scmp.eq.s32.totalorder %s51, 0
      %p261 = por %p259, %p260
      %p262 = scmp.ne.s32.totalorder %s250, %s251
      %p263 = scmp.eq.s32.totalorder %s52, 3
      %p264 = por %p262, %p263
      %p266 = scmp.ne.s32.totalorder %s251, %s265
      %p267 = scmp.eq.s32.totalorder %s52, 0
      %p268 = por %p266, %p267
      %s270 = sadd.s32 %s269, 1
      %p273 = scmp.eq.s32.totalorder %s46, 3
      %p274 = scmp.ne.s32.totalorder %s269, %s271
      %p275 = scmp.eq.s32.totalorder %s46, 0
      %p276 = por %p274, %p275
      %p277 = scmp.ne.s32.totalorder %s269, %s271
      %p278 = scmp.eq.s32.totalorder %s51, 3
      %p279 = por %p277, %p278
      %p280 = scmp.ne.s32.totalorder %s271, %s272
      %p281 = scmp.eq.s32.totalorder %s51, 0
      %p282 = por %p280, %p281
      %p283 = scmp.ne.s32.totalorder %s271, %s272
      %p284 = scmp.eq.s32.totalorder %s52, 3
      %p285 = por %p283, %p284
      %p287 = scmp.ne.s32.totalorder %s272, %s286
      %p288 = scmp.eq.s32.totalorder %s52, 0
      %p289 = por %p287, %p288
      %s291 = sadd.s32 %s290, 1
      %p294 = scmp.eq.s32.totalorder %s46, 3
      %p295 = scmp.ne.s32.totalorder %s290, %s292
      %p296 = scmp.eq.s32.totalorder %s46, 0
      %p297 = por %p295, %p296
      %p298 = scmp.ne.s32.totalorder %s290, %s292
      %p299 = scmp.eq.s32.totalorder %s51, 3
      %p300 = por %p298, %p299
      %p301 = scmp.ne.s32.totalorder %s292, %s293
      %p302 = scmp.eq.s32.totalorder %s51, 0
      %p303 = por %p301, %p302
      %p304 = scmp.ne.s32.totalorder %s292, %s293
      %p305 = scmp.eq.s32.totalorder %s52, 3
      %p306 = por %p304, %p305
      %p308 = scmp.ne.s32.totalorder %s293, %s307
      %p309 = scmp.eq.s32.totalorder %s52, 0
      %p310 = por %p308, %p309
      %s312 = sadd.s32 %s311, 1
      %p315 = scmp.eq.s32.totalorder %s46, 3
      %p316 = scmp.ne.s32.totalorder %s311, %s313
      %p317 = scmp.eq.s32.totalorder %s46, 0
      %p318 = por %p316, %p317
      %p319 = scmp.ne.s32.totalorder %s311, %s313
      %p320 = scmp.eq.s32.totalorder %s51, 3
      %p321 = por %p319, %p320
      %p322 = scmp.ne.s32.totalorder %s313, %s314
      %p323 = scmp.eq.s32.totalorder %s51, 0
      %p324 = por %p322, %p323
      %p325 = scmp.ne.s32.totalorder %s313, %s314
      %p326 = scmp.eq.s32.totalorder %s52, 3
      %p327 = por %p325, %p326
      %p329 = scmp.ne.s32.totalorder %s314, %s328
      %p330 = scmp.eq.s32.totalorder %s52, 0
      %p331 = por %p329, %p330
      %s333 = sadd.s32 %s332, 1
      %p336 = scmp.eq.s32.totalorder %s46, 3
      %p337 = scmp.ne.s32.totalorder %s332, %s334
      %p338 = scmp.eq.s32.totalorder %s46, 0
      %p339 = por %p337, %p338
      %p340 = scmp.ne.s32.totalorder %s332, %s334
      %p341 = scmp.eq.s32.totalorder %s51, 3
      %p342 = por %p340, %p341
      %p343 = scmp.ne.s32.totalorder %s334, %s335
      %p344 = scmp.eq.s32.totalorder %s51, 0
      %p345 = por %p343, %p344
      %p346 = scmp.ne.s32.totalorder %s334, %s335
      %p347 = scmp.eq.s32.totalorder %s52, 3
      %p348 = por %p346, %p347
      %p350 = scmp.ne.s32.totalorder %s335, %s349
      %p351 = scmp.eq.s32.totalorder %s52, 0
      %p352 = por %p350, %p351
      %s354 = sadd.s32 %s353, 1
      %p357 = scmp.eq.s32.totalorder %s46, 3
      %p358 = scmp.ne.s32.totalorder %s353, %s355
      %p359 = scmp.eq.s32.totalorder %s46, 0
      %p360 = por %p358, %p359
      %p361 = scmp.ne.s32.totalorder %s353, %s355
      %p362 = scmp.eq.s32.totalorder %s51, 3
      %p363 = por %p361, %p362
      %p364 = scmp.ne.s32.totalorder %s355, %s356
      %p365 = scmp.eq.s32.totalorder %s51, 0
      %p366 = por %p364, %p365
      %p367 = scmp.ne.s32.totalorder %s355, %s356
      %p368 = scmp.eq.s32.totalorder %s52, 3
      %p369 = por %p367, %p368
      %p371 = scmp.ne.s32.totalorder %s356, %s370
      %p372 = scmp.eq.s32.totalorder %s52, 0
      %p373 = por %p371, %p372
      %s375 = sadd.s32 %s374, 1
      %p378 = scmp.eq.s32.totalorder %s46, 3
      %p379 = scmp.ne.s32.totalorder %s374, %s376
      %p380 = scmp.eq.s32.totalorder %s46, 0
      %p381 = por %p379, %p380
      %p382 = scmp.ne.s32.totalorder %s374, %s376
      %p383 = scmp.eq.s32.totalorder %s51, 3
      %p384 = por %p382, %p383
      %p385 = scmp.ne.s32.totalorder %s376, %s377
      %p386 = scmp.eq.s32.totalorder %s51, 0
      %p387 = por %p385, %p386
      %p388 = scmp.ne.s32.totalorder %s376, %s377
      %p389 = scmp.eq.s32.totalorder %s52, 3
      %p390 = por %p388, %p389
      %p392 = scmp.ne.s32.totalorder %s377, %s391
      %p393 = scmp.eq.s32.totalorder %s52, 0
      %p394 = por %p392, %p393
      %s396 = sadd.s32 %s395, 1
      %p399 = scmp.eq.s32.totalorder %s46, 3
      %p400 = scmp.ne.s32.totalorder %s395, %s397
      %p401 = scmp.eq.s32.totalorder %s46, 0
      %p402 = por %p400, %p401
      %p403 = scmp.ne.s32.totalorder %s395, %s397
      %p404 = scmp.eq.s32.totalorder %s51, 3
      %p405 = por %p403, %p404
      %p406 = scmp.ne.s32.totalorder %s397, %s398
      %p407 = scmp.eq.s32.totalorder %s51, 0
      %p408 = por %p406, %p407
      %p409 = scmp.ne.s32.totalorder %s397, %s398
      %p410 = scmp.eq.s32.totalorder %s52, 3
      %p411 = por %p409, %p410
      %p413 = scmp.ne.s32.totalorder %s398, %s412
      %p414 = scmp.eq.s32.totalorder %s52, 0
      %p415 = por %p413, %p414
      %s417 = sadd.s32 %s416, 1
      %p420 = scmp.eq.s32.totalorder %s46, 3
      %p421 = scmp.ne.s32.totalorder %s416, %s418
      %p422 = scmp.eq.s32.totalorder %s46, 0
      %p423 = por %p421, %p422
      %p424 = scmp.ne.s32.totalorder %s416, %s418
      %p425 = scmp.eq.s32.totalorder %s51, 3
      %p426 = por %p424, %p425
      %p427 = scmp.ne.s32.totalorder %s418, %s419
      %p428 = scmp.eq.s32.totalorder %s51, 0
      %p429 = por %p427, %p428
      %p430 = scmp.ne.s32.totalorder %s418, %s419
      %p431 = scmp.eq.s32.totalorder %s52, 3
      %p432 = por %p430, %p431
      %p434 = scmp.ne.s32.totalorder %s419, %s433
      %p435 = scmp.eq.s32.totalorder %s52, 0
      %p436 = por %p434, %p435
      %s438 = sadd.s32 %s437, 1
      %p441 = scmp.eq.s32.totalorder %s46, 3
      %p442 = scmp.ne.s32.totalorder %s437, %s439
      %p443 = scmp.eq.s32.totalorder %s46, 0
      %p444 = por %p442, %p443
      %p445 = scmp.ne.s32.totalorder %s437, %s439
      %p446 = scmp.eq.s32.totalorder %s51, 3
      %p447 = por %p445, %p446
      %p448 = scmp.ne.s32.totalorder %s439, %s440
      %p449 = scmp.eq.s32.totalorder %s51, 0
      %p450 = por %p448, %p449
      %p451 = scmp.ne.s32.totalorder %s439, %s440
      %p452 = scmp.eq.s32.totalorder %s52, 3
      %p453 = por %p451, %p452
      %p455 = scmp.ne.s32.totalorder %s440, %s454
      %p456 = scmp.eq.s32.totalorder %s52, 0
      %p457 = por %p455, %p456
      %s459 = sadd.s32 %s458, 1
      %p462 = scmp.eq.s32.totalorder %s46, 3
      %p463 = scmp.ne.s32.totalorder %s458, %s460
      %p464 = scmp.eq.s32.totalorder %s46, 0
      %p465 = por %p463, %p464
      %p466 = scmp.ne.s32.totalorder %s458, %s460
      %p467 = scmp.eq.s32.totalorder %s51, 3
      %p468 = por %p466, %p467
      %p469 = scmp.ne.s32.totalorder %s460, %s461
      %p470 = scmp.eq.s32.totalorder %s51, 0
      %p471 = por %p469, %p470
      %p472 = scmp.ne.s32.totalorder %s460, %s461
      %p473 = scmp.eq.s32.totalorder %s52, 3
      %p474 = por %p472, %p473
      %p476 = scmp.ne.s32.totalorder %s461, %s475
      %p477 = scmp.eq.s32.totalorder %s52, 0
      %p478 = por %p476, %p477
      %s480 = sadd.s32 %s479, 1
      %p483 = scmp.eq.s32.totalorder %s46, 3
      %p484 = scmp.ne.s32.totalorder %s479, %s481
      %p485 = scmp.eq.s32.totalorder %s46, 0
      %p486 = por %p484, %p485
      %p487 = scmp.ne.s32.totalorder %s479, %s481
      %p488 = scmp.eq.s32.totalorder %s51, 3
      %p489 = por %p487, %p488
      %p490 = scmp.ne.s32.totalorder %s481, %s482
      %p491 = scmp.eq.s32.totalorder %s51, 0
      %p492 = por %p490, %p491
      %p493 = scmp.ne.s32.totalorder %s481, %s482
      %p494 = scmp.eq.s32.totalorder %s52, 3
      %p495 = por %p493, %p494
      %p497 = scmp.ne.s32.totalorder %s482, %s496
      %p498 = scmp.eq.s32.totalorder %s52, 0
      %p499 = por %p497, %p498
      %s501 = sadd.s32 %s500, 1
      %p504 = scmp.eq.s32.totalorder %s46, 3
      %p505 = scmp.ne.s32.totalorder %s500, %s502
      %p506 = scmp.eq.s32.totalorder %s46, 0
      %p507 = por %p505, %p506
      %p508 = scmp.ne.s32.totalorder %s500, %s502
      %p509 = scmp.eq.s32.totalorder %s51, 3
      %p510 = por %p508, %p509
      %p511 = scmp.ne.s32.totalorder %s502, %s503
      %p512 = scmp.eq.s32.totalorder %s51, 0
      %p513 = por %p511, %p512
      %p514 = scmp.ne.s32.totalorder %s502, %s503
      %p515 = scmp.eq.s32.totalorder %s52, 3
      %p516 = por %p514, %p515
      %p518 = scmp.ne.s32.totalorder %s503, %s517
      %p519 = scmp.eq.s32.totalorder %s52, 0
      %p520 = por %p518, %p519
      %s522 = sadd.s32 %s521, 1
      %p525 = scmp.eq.s32.totalorder %s46, 3
      %p526 = scmp.ne.s32.totalorder %s521, %s523
      %p527 = scmp.eq.s32.totalorder %s46, 0
      %p528 = por %p526, %p527
      %p529 = scmp.ne.s32.totalorder %s521, %s523
      %p530 = scmp.eq.s32.totalorder %s51, 3
      %p531 = por %p529, %p530
      %p532 = scmp.ne.s32.totalorder %s523, %s524
      %p533 = scmp.eq.s32.totalorder %s51, 0
      %p534 = por %p532, %p533
      %p535 = scmp.ne.s32.totalorder %s523, %s524
      %p536 = scmp.eq.s32.totalorder %s52, 3
      %p537 = por %p535, %p536
      %p539 = scmp.ne.s32.totalorder %s524, %s538
      %p540 = scmp.eq.s32.totalorder %s52, 0
      %p541 = por %p539, %p540
      %s543 = sadd.s32 %s542, 1
      %p546 = scmp.eq.s32.totalorder %s46, 3
      %p547 = scmp.ne.s32.totalorder %s542, %s544
      %p548 = scmp.eq.s32.totalorder %s46, 0
      %p549 = por %p547, %p548
      %p550 = scmp.ne.s32.totalorder %s542, %s544
      %p551 = scmp.eq.s32.totalorder %s51, 3
      %p552 = por %p550, %p551
      %p553 = scmp.ne.s32.totalorder %s544, %s545
      %p554 = scmp.eq.s32.totalorder %s51, 0
      %p555 = por %p553, %p554
      %p556 = scmp.ne.s32.totalorder %s544, %s545
      %p557 = scmp.eq.s32.totalorder %s52, 3
      %p558 = por %p556, %p557
      %p560 = scmp.ne.s32.totalorder %s545, %s559
      %p561 = scmp.eq.s32.totalorder %s52, 0
      %p562 = por %p560, %p561
      %s564 = sadd.s32 %s563, 1
      %p567 = scmp.eq.s32.totalorder %s46, 3
      %p568 = scmp.ne.s32.totalorder %s563, %s565
      %p569 = scmp.eq.s32.totalorder %s46, 0
      %p570 = por %p568, %p569
      %p571 = scmp.ne.s32.totalorder %s563, %s565
      %p572 = scmp.eq.s32.totalorder %s51, 3
      %p573 = por %p571, %p572
      %p574 = scmp.ne.s32.totalorder %s565, %s566
      %p575 = scmp.eq.s32.totalorder %s51, 0
      %p576 = por %p574, %p575
      %p577 = scmp.ne.s32.totalorder %s565, %s566
      %p578 = scmp.eq.s32.totalorder %s52, 3
      %p579 = por %p577, %p578
      %p581 = scmp.ne.s32.totalorder %s566, %s580
      %p582 = scmp.eq.s32.totalorder %s52, 0
      %p583 = por %p581, %p582
      %s584 = ssub.s32 %s46, %s53
      %p585 = scmp.eq.s32.totalorder %s584, 0
      %s587 = sadd.s32 %s586, 1
      %s588 = scalar_select %p585, %s586, %s587
      %p591 = pneg %p585
      %p592 = scmp.eq.s32.totalorder %s46, 3
      %p593 = por %p591, %p592
      %p594 = scmp.ne.s32.totalorder %s586, %s589
      %p595 = scmp.eq.s32.totalorder %s46, 0
      %p596 = por %p594, %p595
      %p597 = scmp.ne.s32.totalorder %s586, %s589
      %p598 = scmp.eq.s32.totalorder %s51, 3
      %p599 = por %p597, %p598
      %p600 = scmp.ne.s32.totalorder %s589, %s590
      %p601 = scmp.eq.s32.totalorder %s51, 0
      %p602 = por %p600, %p601
      %p603 = scmp.ne.s32.totalorder %s589, %s590
      %p604 = scmp.eq.s32.totalorder %s52, 3
      %p605 = por %p603, %p604
      %p607 = scmp.ne.s32.totalorder %s590, %s606
      %p608 = scmp.eq.s32.totalorder %s52, 0
      %p609 = por %p607, %p608
      %s610 = ssub.s32 %s46, %s53
      %p611 = scmp.eq.s32.totalorder %s610, 0
      %s613 = sadd.s32 %s612, 1
      %s614 = scalar_select %p611, %s612, %s613
      %p617 = pneg %p611
      %p618 = scmp.eq.s32.totalorder %s46, 3
      %p619 = por %p617, %p618
      %p620 = scmp.ne.s32.totalorder %s612, %s615
      %p621 = scmp.eq.s32.totalorder %s46, 0
      %p622 = por %p620, %p621
      %p623 = scmp.ne.s32.totalorder %s612, %s615
      %p624 = scmp.eq.s32.totalorder %s51, 3
      %p625 = por %p623, %p624
      %p626 = scmp.ne.s32.totalorder %s615, %s616
      %p627 = scmp.eq.s32.totalorder %s51, 0
      %p628 = por %p626, %p627
      %p629 = scmp.ne.s32.totalorder %s615, %s616
      %p630 = scmp.eq.s32.totalorder %s52, 3
      %p631 = por %p629, %p630
      %p633 = scmp.ne.s32.totalorder %s616, %s632
      %p634 = scmp.eq.s32.totalorder %s52, 0
      %p635 = por %p633, %p634
      %p636 = scmp.le.s32.totalorder 1, %s46
      %p637 = scmp.lt.s32.totalorder %s46, 5
      %p638 = pnand %p636, %p637
      %p639 = pneg %p638
      // Predicated region
      $region9: #{tpu_custom_call.1} parent=5 // pred_check
        _
      $region10: #{tpu_custom_call.1} parent=5 // pred_check_branch
        %641 = sbr.rel (%p638) target = $region12
      $region11: #{tpu_custom_call.1} parent=5 // pred_region
        %s642 = ssub.s32 %s46, 1
        // Predicated region
        $region13: #{tpu_custom_call.1} parent=11 // pred_check
          %p643 = pneg %p93
        $region14: #{tpu_custom_call.1} parent=11 // pred_check_branch
          %645 = sbr.rel (%p643) target = $region16
        $region15: #{tpu_custom_call.1} parent=11 // pred_region
          %s647 = ssub.s32 32, 32
          %648 = vsyncadd [#allocation6], %s647
          %s650 = sshll.u32 [#allocation5], 4
          %s651 = int_to_ptr.vmem [resolvable:$true] %s650
          %653 = dma.hbm_to_vmem [thread:$0]  %s1, 32, %s651, [#allocation6]
        $region16: #{tpu_custom_call.1} parent=11 // pred_fallthru
          _
        // Predicated region
        $region17: #{tpu_custom_call.1} parent=11 // pred_check
          %p654 = pneg %p114
        $region18: #{tpu_custom_call.1} parent=11 // pred_check_branch
          %656 = sbr.rel (%p654) target = $region20
        $region19: #{tpu_custom_call.1} parent=11 // pred_region
          %s658 = ssub.s32 8192, 8192
          %659 = vsyncadd [#allocation6], %s658
          %s660 = sshll.u32 [#allocation7], 4
          %s661 = int_to_ptr.vmem [resolvable:$true] %s660
          %666 = dma.hbm_to_vmem [thread:$0]  %s2, 8192, %s661, [#allocation6], 256, 256, 16
        $region20: #{tpu_custom_call.1} parent=11 // pred_fallthru
          _
        // Predicated region
        $region21: #{tpu_custom_call.1} parent=11 // pred_check
          %p667 = pneg %p135
        $region22: #{tpu_custom_call.1} parent=11 // pred_check_branch
          %669 = sbr.rel (%p667) target = $region24
        $region23: #{tpu_custom_call.1} parent=11 // pred_region
          %s671 = ssub.s32 1024, 1024
          %672 = vsyncadd [#allocation9], %s671
          %s673 = sshll.u32 [#allocation8], 4
          %s674 = int_to_ptr.vmem [resolvable:$true] %s673
          %679 = dma.hbm_to_vmem [thread:$0]  %s3, 1024, %s674, [#allocation9], 64, 64, 4
        $region24: #{tpu_custom_call.1} parent=11 // pred_fallthru
          _
        // Predicated region
        $region25: #{tpu_custom_call.1} parent=11 // pred_check
          %p680 = pneg %p156
        $region26: #{tpu_custom_call.1} parent=11 // pred_check_branch
          %682 = sbr.rel (%p680) target = $region28
        $region27: #{tpu_custom_call.1} parent=11 // pred_region
          _
        $region28: #{tpu_custom_call.1} parent=11 // pred_fallthru
          _
        // Predicated region
        $region29: #{tpu_custom_call.1} parent=11 // pred_check
          %p683 = pneg %p177
        $region30: #{tpu_custom_call.1} parent=11 // pred_check_branch
          %685 = sbr.rel (%p683) target = $region32
        $region31: #{tpu_custom_call.1} parent=11 // pred_region
          _
        $region32: #{tpu_custom_call.1} parent=11 // pred_fallthru
          _
        // Predicated region
        $region33: #{tpu_custom_call.1} parent=11 // pred_check
          %p686 = pneg %p198
        $region34: #{tpu_custom_call.1} parent=11 // pred_check_branch
          %688 = sbr.rel (%p686) target = $region36
        $region35: #{tpu_custom_call.1} parent=11 // pred_region
          _
        $region36: #{tpu_custom_call.1} parent=11 // pred_fallthru
          _
        // Predicated region
        $region37: #{tpu_custom_call.1} parent=11 // pred_check
          %p689 = pneg %p219
        $region38: #{tpu_custom_call.1} parent=11 // pred_check_branch
          %691 = sbr.rel (%p689) target = $region40
        $region39: #{tpu_custom_call.1} parent=11 // pred_region
          %s693 = ssub.s32 1024, 1024
          %694 = vsyncadd [#allocation9], %s693
          %s695 = sshll.u32 [#allocation10], 4
          %s696 = int_to_ptr.vmem [resolvable:$true] %s695
          %701 = dma.hbm_to_vmem [thread:$0]  %s7, 1024, %s696, [#allocation9], 64, 64, 4
        $region40: #{tpu_custom_call.1} parent=11 // pred_fallthru
          _
        // Predicated region
        $region41: #{tpu_custom_call.1} parent=11 // pred_check
          %p702 = pneg %p240
        $region42: #{tpu_custom_call.1} parent=11 // pred_check_branch
          %704 = sbr.rel (%p702) target = $region44
        $region43: #{tpu_custom_call.1} parent=11 // pred_region
          _
        $region44: #{tpu_custom_call.1} parent=11 // pred_fallthru
          _
        // Predicated region
        $region45: #{tpu_custom_call.1} parent=11 // pred_check
          %p705 = pneg %p261
        $region46: #{tpu_custom_call.1} parent=11 // pred_check_branch
          %707 = sbr.rel (%p705) target = $region48
        $region47: #{tpu_custom_call.1} parent=11 // pred_region
          _
        $region48: #{tpu_custom_call.1} parent=11 // pred_fallthru
          _
        // Predicated region
        $region49: #{tpu_custom_call.1} parent=11 // pred_check
          %p708 = pneg %p282
        $region50: #{tpu_custom_call.1} parent=11 // pred_check_branch
          %710 = sbr.rel (%p708) target = $region52
        $region51: #{tpu_custom_call.1} parent=11 // pred_region
          _
        $region52: #{tpu_custom_call.1} parent=11 // pred_fallthru
          _
        // Predicated region
        $region53: #{tpu_custom_call.1} parent=11 // pred_check
          %p711 = pneg %p303
        $region54: #{tpu_custom_call.1} parent=11 // pred_check_branch
          %713 = sbr.rel (%p711) target = $region56
        $region55: #{tpu_custom_call.1} parent=11 // pred_region
          %s715 = ssub.s32 1024, 1024
          %716 = vsyncadd [#allocation12], %s715
          %s717 = sshll.u32 [#allocation11], 4
          %s718 = int_to_ptr.vmem [resolvable:$true] %s717
          %723 = dma.hbm_to_vmem [thread:$0]  %s11, 1024, %s718, [#allocation12], 64, 64, 4
        $region56: #{tpu_custom_call.1} parent=11 // pred_fallthru
          _
        // Predicated region
        $region57: #{tpu_custom_call.1} parent=11 // pred_check
          %p724 = pneg %p324
        $region58: #{tpu_custom_call.1} parent=11 // pred_check_branch
          %726 = sbr.rel (%p724) target = $region60
        $region59: #{tpu_custom_call.1} parent=11 // pred_region
          _
        $region60: #{tpu_custom_call.1} parent=11 // pred_fallthru
          _
        // Predicated region
        $region61: #{tpu_custom_call.1} parent=11 // pred_check
          %p727 = pneg %p345
        $region62: #{tpu_custom_call.1} parent=11 // pred_check_branch
          %729 = sbr.rel (%p727) target = $region64
        $region63: #{tpu_custom_call.1} parent=11 // pred_region
          _
        $region64: #{tpu_custom_call.1} parent=11 // pred_fallthru
          _
        // Predicated region
        $region65: #{tpu_custom_call.1} parent=11 // pred_check
          %p730 = pneg %p366
        $region66: #{tpu_custom_call.1} parent=11 // pred_check_branch
          %732 = sbr.rel (%p730) target = $region68
        $region67: #{tpu_custom_call.1} parent=11 // pred_region
          _
        $region68: #{tpu_custom_call.1} parent=11 // pred_fallthru
          _
        // Predicated region
        $region69: #{tpu_custom_call.1} parent=11 // pred_check
          %p733 = pneg %p387
        $region70: #{tpu_custom_call.1} parent=11 // pred_check_branch
          %735 = sbr.rel (%p733) target = $region72
        $region71: #{tpu_custom_call.1} parent=11 // pred_region
          %s737 = ssub.s32 1024, 1024
          %738 = vsyncadd [#allocation12], %s737
          %s739 = sshll.u32 [#allocation13], 4
          %s740 = int_to_ptr.vmem [resolvable:$true] %s739
          %745 = dma.hbm_to_vmem [thread:$0]  %s15, 1024, %s740, [#allocation12], 64, 64, 4
        $region72: #{tpu_custom_call.1} parent=11 // pred_fallthru
          _
        // Predicated region
        $region73: #{tpu_custom_call.1} parent=11 // pred_check
          %p746 = pneg %p408
        $region74: #{tpu_custom_call.1} parent=11 // pred_check_branch
          %748 = sbr.rel (%p746) target = $region76
        $region75: #{tpu_custom_call.1} parent=11 // pred_region
          _
        $region76: #{tpu_custom_call.1} parent=11 // pred_fallthru
          _
        // Predicated region
        $region77: #{tpu_custom_call.1} parent=11 // pred_check
          %p749 = pneg %p429
        $region78: #{tpu_custom_call.1} parent=11 // pred_check_branch
          %751 = sbr.rel (%p749) target = $region80
        $region79: #{tpu_custom_call.1} parent=11 // pred_region
          _
        $region80: #{tpu_custom_call.1} parent=11 // pred_fallthru
          _
        // Predicated region
        $region81: #{tpu_custom_call.1} parent=11 // pred_check
          %p752 = pneg %p450
        $region82: #{tpu_custom_call.1} parent=11 // pred_check_branch
          %754 = sbr.rel (%p752) target = $region84
        $region83: #{tpu_custom_call.1} parent=11 // pred_region
          _
        $region84: #{tpu_custom_call.1} parent=11 // pred_fallthru
          _
        // Predicated region
        $region85: #{tpu_custom_call.1} parent=11 // pred_check
          %p755 = pneg %p471
        $region86: #{tpu_custom_call.1} parent=11 // pred_check_branch
          %757 = sbr.rel (%p755) target = $region88
        $region87: #{tpu_custom_call.1} parent=11 // pred_region
          %s759 = ssub.s32 1024, 1024
          %760 = vsyncadd [#allocation15], %s759
          %s761 = sshll.u32 [#allocation14], 4
          %s762 = int_to_ptr.vmem [resolvable:$true] %s761
          %767 = dma.hbm_to_vmem [thread:$0]  %s19, 1024, %s762, [#allocation15], 64, 64, 4
        $region88: #{tpu_custom_call.1} parent=11 // pred_fallthru
          _
        // Predicated region
        $region89: #{tpu_custom_call.1} parent=11 // pred_check
          %p768 = pneg %p492
        $region90: #{tpu_custom_call.1} parent=11 // pred_check_branch
          %770 = sbr.rel (%p768) target = $region92
        $region91: #{tpu_custom_call.1} parent=11 // pred_region
          _
        $region92: #{tpu_custom_call.1} parent=11 // pred_fallthru
          _
        // Predicated region
        $region93: #{tpu_custom_call.1} parent=11 // pred_check
          %p771 = pneg %p513
        $region94: #{tpu_custom_call.1} parent=11 // pred_check_branch
          %773 = sbr.rel (%p771) target = $region96
        $region95: #{tpu_custom_call.1} parent=11 // pred_region
          _
        $region96: #{tpu_custom_call.1} parent=11 // pred_fallthru
          _
        // Predicated region
        $region97: #{tpu_custom_call.1} parent=11 // pred_check
          %p774 = pneg %p534
        $region98: #{tpu_custom_call.1} parent=11 // pred_check_branch
          %776 = sbr.rel (%p774) target = $region100
        $region99: #{tpu_custom_call.1} parent=11 // pred_region
          _
        $region100: #{tpu_custom_call.1} parent=11 // pred_fallthru
          _
        // Predicated region
        $region101: #{tpu_custom_call.1} parent=11 // pred_check
          %p777 = pneg %p555
        $region102: #{tpu_custom_call.1} parent=11 // pred_check_branch
          %779 = sbr.rel (%p777) target = $region104
        $region103: #{tpu_custom_call.1} parent=11 // pred_region
          %s781 = ssub.s32 1024, 1024
          %782 = vsyncadd [#allocation15], %s781
          %s783 = sshll.u32 [#allocation16], 4
          %s784 = int_to_ptr.vmem [resolvable:$true] %s783
          %789 = dma.hbm_to_vmem [thread:$0]  %s23, 1024, %s784, [#allocation15], 64, 64, 4
        $region104: #{tpu_custom_call.1} parent=11 // pred_fallthru
          _
        // Predicated region
        $region105: #{tpu_custom_call.1} parent=11 // pred_check
          %p790 = pneg %p576
        $region106: #{tpu_custom_call.1} parent=11 // pred_check_branch
          %792 = sbr.rel (%p790) target = $region108
        $region107: #{tpu_custom_call.1} parent=11 // pred_region
          _
        $region108: #{tpu_custom_call.1} parent=11 // pred_fallthru
          _
      $region12: #{tpu_custom_call.1} parent=5 // pred_fallthru
        _
      %p793 = scmp.lt.s32.totalorder %s46, 4
      // Predicated region
      $region109: #{tpu_custom_call.1} parent=5 // pred_check
        %p794 = pneg %p793
      $region110: #{tpu_custom_call.1} parent=5 // pred_check_branch
        %796 = sbr.rel (%p794) target = $region112
      $region111: #{tpu_custom_call.1} parent=5 // pred_region
        // Predicated region
        $region113: #{tpu_custom_call.1} parent=111 // pred_check
          %p797 = pneg %p66
        $region114: #{tpu_custom_call.1} parent=111 // pred_check_branch
          %799 = sbr.rel (%p797) target = $region116
        $region115: #{tpu_custom_call.1} parent=111 // pred_region
          %s800 = sand.u32 %s56, 1
          %s801 = scalar_lea.sflag [#allocation3], %s800
          %s802 = sand.u32 %s56, 1
          %s803 = smul.addr %s802, 16
          %s804 = scalar_lea.vmem [#allocation2], %s803
          %s806 = ssub.s32 256, 256
          %807 = vsyncadd %s801, %s806
          %s808 = smul.addr %s46, 2
          %s809 = smul.addr %s808, 128
          %s810 = scalar_lea.hbm %s0, %s809
          %s812 = sshll.u32 %s804, 4
          %s813 = int_to_ptr.vmem [resolvable:$true] %s812
          %815 = dma.hbm_to_vmem [thread:$0]  %s810, 256, %s813, %s801
        $region116: #{tpu_custom_call.1} parent=111 // pred_fallthru
          _
      $region112: #{tpu_custom_call.1} parent=5 // pred_fallthru
        _
      %p816 = scmp.le.s32.totalorder 1, %s46
      %p817 = scmp.lt.s32.totalorder %s46, 5
      %p818 = pnand %p816, %p817
      %p819 = pneg %p818
      // Predicated region
      $region117: #{tpu_custom_call.1} parent=5 // pred_check
        _
      $region118: #{tpu_custom_call.1} parent=5 // pred_check_branch
        %821 = sbr.rel (%p818) target = $region120
      $region119: #{tpu_custom_call.1} parent=5 // pred_region
        %s822 = ssub.s32 %s46, 1
        %s823 = sand.u32 %s59, 1
        %s824 = scalar_lea.sflag [#allocation3], %s823
        %s825 = sand.u32 %s59, 1
        %s826 = smul.addr %s825, 16
        %s827 = scalar_lea.vmem [#allocation2], %s826
        // Predicated region
        $region121: #{tpu_custom_call.1} parent=119 // pred_check
          %p828 = pneg %p72
        $region122: #{tpu_custom_call.1} parent=119 // pred_check_branch
          %830 = sbr.rel (%p828) target = $region124
        $region123: #{tpu_custom_call.1} parent=119 // pred_region
          %831 = dma.done %s824, 256
        $region124: #{tpu_custom_call.1} parent=119 // pred_fallthru
          _
        // Predicated region
        $region125: #{tpu_custom_call.1} parent=119 // pred_check
          %p832 = pneg %p93
        $region126: #{tpu_custom_call.1} parent=119 // pred_check_branch
          %834 = sbr.rel (%p832) target = $region128
        $region127: #{tpu_custom_call.1} parent=119 // pred_region
          %835 = dma.done [#allocation6], 32
        $region128: #{tpu_custom_call.1} parent=119 // pred_fallthru
          _
        // Predicated region
        $region129: #{tpu_custom_call.1} parent=119 // pred_check
          %p836 = pneg %p114
        $region130: #{tpu_custom_call.1} parent=119 // pred_check_branch
          %838 = sbr.rel (%p836) target = $region132
        $region131: #{tpu_custom_call.1} parent=119 // pred_region
          %839 = dma.done [#allocation6], 8192
        $region132: #{tpu_custom_call.1} parent=119 // pred_fallthru
          _
        // Predicated region
        $region133: #{tpu_custom_call.1} parent=119 // pred_check
          %p840 = pneg %p135
        $region134: #{tpu_custom_call.1} parent=119 // pred_check_branch
          %842 = sbr.rel (%p840) target = $region136
        $region135: #{tpu_custom_call.1} parent=119 // pred_region
          %843 = dma.done [#allocation9], 1024
        $region136: #{tpu_custom_call.1} parent=119 // pred_fallthru
          _
        // Predicated region
        $region137: #{tpu_custom_call.1} parent=119 // pred_check
          %p844 = pneg %p219
        $region138: #{tpu_custom_call.1} parent=119 // pred_check_branch
          %846 = sbr.rel (%p844) target = $region140
        $region139: #{tpu_custom_call.1} parent=119 // pred_region
          %847 = dma.done [#allocation9], 1024
        $region140: #{tpu_custom_call.1} parent=119 // pred_fallthru
          _
        // Predicated region
        $region141: #{tpu_custom_call.1} parent=119 // pred_check
          %p848 = pneg %p303
        $region142: #{tpu_custom_call.1} parent=119 // pred_check_branch
          %850 = sbr.rel (%p848) target = $region144
        $region143: #{tpu_custom_call.1} parent=119 // pred_region
          %851 = dma.done [#allocation12], 1024
        $region144: #{tpu_custom_call.1} parent=119 // pred_fallthru
          _
        // Predicated region
        $region145: #{tpu_custom_call.1} parent=119 // pred_check
          %p852 = pneg %p387
        $region146: #{tpu_custom_call.1} parent=119 // pred_check_branch
          %854 = sbr.rel (%p852) target = $region148
        $region147: #{tpu_custom_call.1} parent=119 // pred_region
          %855 = dma.done [#allocation12], 1024
        $region148: #{tpu_custom_call.1} parent=119 // pred_fallthru
          _
        // Predicated region
        $region149: #{tpu_custom_call.1} parent=119 // pred_check
          %p856 = pneg %p471
        $region150: #{tpu_custom_call.1} parent=119 // pred_check_branch
          %858 = sbr.rel (%p856) target = $region152
        $region151: #{tpu_custom_call.1} parent=119 // pred_region
          %859 = dma.done [#allocation15], 1024
        $region152: #{tpu_custom_call.1} parent=119 // pred_fallthru
          _
        // Predicated region
        $region153: #{tpu_custom_call.1} parent=119 // pred_check
          %p860 = pneg %p555
        $region154: #{tpu_custom_call.1} parent=119 // pred_check_branch
          %862 = sbr.rel (%p860) target = $region156
        $region155: #{tpu_custom_call.1} parent=119 // pred_region
          %863 = dma.done [#allocation15], 1024
        $region156: #{tpu_custom_call.1} parent=119 // pred_fallthru
          _
        %s864 = sand.u32 %s59, 1
        %s865 = scalar_lea.sflag [#allocation3], %s864
        %s866 = sand.u32 %s59, 1
        %s867 = smul.addr %s866, 16
        %s868 = scalar_lea.vmem [#allocation2], %s867
        %p869 = pneg %p72
        %p870 = pneg %p69
        %p871 = pneg %p93
        %p872 = pneg %p90
        %p873 = pneg %p114
        %p874 = pneg %p111
        %p875 = pneg %p135
        %p876 = pneg %p132
        %p877 = pneg %p156
        %p878 = pneg %p153
        %p879 = pneg %p177
        %p880 = pneg %p174
        %p881 = pneg %p198
        %p882 = pneg %p195
        %p883 = pneg %p219
        %p884 = pneg %p216
        %p885 = pneg %p240
        %p886 = pneg %p237
        %p887 = pneg %p261
        %p888 = pneg %p258
        %p889 = pneg %p282
        %p890 = pneg %p279
        %p891 = pneg %p303
        %p892 = pneg %p300
        %p893 = pneg %p324
        %p894 = pneg %p321
        %p895 = pneg %p345
        %p896 = pneg %p342
        %p897 = pneg %p366
        %p898 = pneg %p363
        %p899 = pneg %p387
        %p900 = pneg %p384
        %p901 = pneg %p408
        %p902 = pneg %p405
        %p903 = pneg %p429
        %p904 = pneg %p426
        %p905 = pneg %p450
        %p906 = pneg %p447
        %p907 = pneg %p471
        %p908 = pneg %p468
        %p909 = pneg %p492
        %p910 = pneg %p489
        %p911 = pneg %p513
        %p912 = pneg %p510
        %p913 = pneg %p534
        %p914 = pneg %p531
        %p915 = pneg %p555
        %p916 = pneg %p552
        %p917 = pneg %p576
        %p918 = pneg %p573
        %p919 = pneg %p602
        %p920 = pneg %p599
        %s921 = sand.u32 %s589, 1
        %s922 = scalar_lea.sflag [#allocation4], %s921
        %s923 = sand.u32 %s589, 1
        %s924 = smul.addr %s923, 16
        %s925 = scalar_lea.vmem [#allocation17], %s924
        %p926 = pneg %p628
        %p927 = pneg %p625
        %s928 = sand.u32 %s615, 1
        %s929 = scalar_lea.sflag [#allocation19], %s928
        %s930 = sand.u32 %s615, 1
        %s931 = smul.addr %s930, 8
        %s932 = scalar_lea.vmem [#allocation18], %s931
        %v934 = vld [vmem:[#allocation5] sm:$0x3]
        %v935 = vld [vmem:[#allocation7] sm:$0xff]
        %v936 = vld [vmem:[#allocation7 + $0x8] sm:$0xff]
        %v937 = vld [vmem:[#allocation7 + $0x10] sm:$0xff]
        %v938 = vld [vmem:[#allocation7 + $0x18] sm:$0xff]
        %v939 = vld [vmem:[#allocation7 + $0x20] sm:$0xff]
        %v940 = vld [vmem:[#allocation7 + $0x28] sm:$0xff]
        %v941 = vld [vmem:[#allocation7 + $0x30] sm:$0xff]
        %v942 = vld [vmem:[#allocation7 + $0x38] sm:$0xff]
        %v943 = vld [vmem:[#allocation7 + $0x40] sm:$0xff]
        %v944 = vld [vmem:[#allocation7 + $0x48] sm:$0xff]
        %v945 = vld [vmem:[#allocation7 + $0x50] sm:$0xff]
        %v946 = vld [vmem:[#allocation7 + $0x58] sm:$0xff]
        %v947 = vld [vmem:[#allocation7 + $0x60] sm:$0xff]
        %v948 = vld [vmem:[#allocation7 + $0x68] sm:$0xff]
        %v949 = vld [vmem:[#allocation7 + $0x70] sm:$0xff]
        %v950 = vld [vmem:[#allocation7 + $0x78] sm:$0xff]
        %v951 = vld [vmem:[#allocation7 + $0x80] sm:$0xff]
        %v952 = vld [vmem:[#allocation7 + $0x88] sm:$0xff]
        %v953 = vld [vmem:[#allocation7 + $0x90] sm:$0xff]
        %v954 = vld [vmem:[#allocation7 + $0x98] sm:$0xff]
        %v955 = vld [vmem:[#allocation7 + $0xa0] sm:$0xff]
        %v956 = vld [vmem:[#allocation7 + $0xa8] sm:$0xff]
        %v957 = vld [vmem:[#allocation7 + $0xb0] sm:$0xff]
        %v958 = vld [vmem:[#allocation7 + $0xb8] sm:$0xff]
        %v959 = vld [vmem:[#allocation7 + $0xc0] sm:$0xff]
        %v960 = vld [vmem:[#allocation7 + $0xc8] sm:$0xff]
        %v961 = vld [vmem:[#allocation7 + $0xd0] sm:$0xff]
        %v962 = vld [vmem:[#allocation7 + $0xd8] sm:$0xff]
        %v963 = vld [vmem:[#allocation7 + $0xe0] sm:$0xff]
        %v964 = vld [vmem:[#allocation7 + $0xe8] sm:$0xff]
        %v965 = vld [vmem:[#allocation7 + $0xf0] sm:$0xff]
        %v966 = vld [vmem:[#allocation7 + $0xf8] sm:$0xff]
        %v967 = vld [vmem:[#allocation7 + $0x100] sm:$0xff]
        %v968 = vld [vmem:[#allocation7 + $0x108] sm:$0xff]
        %v969 = vld [vmem:[#allocation7 + $0x110] sm:$0xff]
        %v970 = vld [vmem:[#allocation7 + $0x118] sm:$0xff]
        %v971 = vld [vmem:[#allocation7 + $0x120] sm:$0xff]
        %v972 = vld [vmem:[#allocation7 + $0x128] sm:$0xff]
        %v973 = vld [vmem:[#allocation7 + $0x130] sm:$0xff]
        %v974 = vld [vmem:[#allocation7 + $0x138] sm:$0xff]
        %v975 = vld [vmem:[#allocation7 + $0x140] sm:$0xff]
        %v976 = vld [vmem:[#allocation7 + $0x148] sm:$0xff]
        %v977 = vld [vmem:[#allocation7 + $0x150] sm:$0xff]
        %v978 = vld [vmem:[#allocation7 + $0x158] sm:$0xff]
        %v979 = vld [vmem:[#allocation7 + $0x160] sm:$0xff]
        %v980 = vld [vmem:[#allocation7 + $0x168] sm:$0xff]
        %v981 = vld [vmem:[#allocation7 + $0x170] sm:$0xff]
        %v982 = vld [vmem:[#allocation7 + $0x178] sm:$0xff]
        %v983 = vld [vmem:[#allocation7 + $0x180] sm:$0xff]
        %v984 = vld [vmem:[#allocation7 + $0x188] sm:$0xff]
        %v985 = vld [vmem:[#allocation7 + $0x190] sm:$0xff]
        %v986 = vld [vmem:[#allocation7 + $0x198] sm:$0xff]
        %v987 = vld [vmem:[#allocation7 + $0x1a0] sm:$0xff]
        %v988 = vld [vmem:[#allocation7 + $0x1a8] sm:$0xff]
        %v989 = vld [vmem:[#allocation7 + $0x1b0] sm:$0xff]
        %v990 = vld [vmem:[#allocation7 + $0x1b8] sm:$0xff]
        %v991 = vld [vmem:[#allocation7 + $0x1c0] sm:$0xff]
        %v992 = vld [vmem:[#allocation7 + $0x1c8] sm:$0xff]
        %v993 = vld [vmem:[#allocation7 + $0x1d0] sm:$0xff]
        %v994 = vld [vmem:[#allocation7 + $0x1d8] sm:$0xff]
        %v995 = vld [vmem:[#allocation7 + $0x1e0] sm:$0xff]
        %v996 = vld [vmem:[#allocation7 + $0x1e8] sm:$0xff]
        %v997 = vld [vmem:[#allocation7 + $0x1f0] sm:$0xff]
        %v998 = vld [vmem:[#allocation7 + $0x1f8] sm:$0xff]
        %v999 = vld [vmem:[%s827] sm:$0xff]
        %v1000 = vld [vmem:[%s827 + $0x8] sm:$0xff]
        %v1002 = vlaneseq
        %v1003 = vshrl.u32 %v1002, 7
        %v1004 = vsub.s32 0, %v1003
        %v1005 = vrot.slane %v934, %v1004
        %v1006 = vlaneseq
        %v1007 = vshrl.u32 %v1006, 7
        %v1008 = vsub.s32 1, %v1007
        %v1009 = vrot.slane %v934, %v1008
        %v1012 = vsub.f32 %v999, %v1005
        %v1013 = vsub.f32 %v1000, %v1009
        %1014 = vmatprep.subr.mxu0 %v966
        %1015 = vmatpush1.xpose.msra.mxu0 %v965
        %1016 = vmatprep.subr.mxu0 %v964
        %1017 = vmatpush1.xpose.msra.mxu0 %v963
        %1018 = vmatprep.subr.mxu0 %v962
        %1019 = vmatpush1.xpose.msra.mxu0 %v961
        %1020 = vmatprep.subr.mxu0 %v960
        %1021 = vmatpush1.xpose.msra.mxu0 %v959
        %1022 = vmatprep.subr.mxu0 %v958
        %1023 = vmatpush1.xpose.msra.mxu0 %v957
        %1024 = vmatprep.subr.mxu0 %v956
        %1025 = vmatpush1.xpose.msra.mxu0 %v955
        %1026 = vmatprep.subr.mxu0 %v954
        %1027 = vmatpush1.xpose.msra.mxu0 %v953
        %1028 = vmatprep.subr.mxu0 %v952
        %1029 = vmatpush1.xpose.msra.mxu0 %v951
        %1030 = vmatprep.subr.mxu0 %v950
        %1031 = vmatpush1.xpose.msra.mxu0 %v949
        %1032 = vmatprep.subr.mxu0 %v948
        %1033 = vmatpush1.xpose.msra.mxu0 %v947
        %1034 = vmatprep.subr.mxu0 %v946
        %1035 = vmatpush1.xpose.msra.mxu0 %v945
        %1036 = vmatprep.subr.mxu0 %v944
        %1037 = vmatpush1.xpose.msra.mxu0 %v943
        %1038 = vmatprep.subr.mxu0 %v942
        %1039 = vmatpush1.xpose.msra.mxu0 %v941
        %1040 = vmatprep.subr.mxu0 %v940
        %1041 = vmatpush1.xpose.msra.mxu0 %v939
        %1042 = vmatprep.subr.mxu0 %v938
        %1043 = vmatpush1.xpose.msra.mxu0 %v937
        %1044 = vmatprep.subr.mxu0 %v936
        %1045 = vmatpush1.xpose.msra.mxu0 %v935
        %1046 = vmatprep.subr.mxu0 %v998
        %1047 = vmatpush2.xpose.msra.mxu0 %v997
        %1048 = vmatprep.subr.mxu0 %v996
        %1049 = vmatpush2.xpose.msra.mxu0 %v995
        %1050 = vmatprep.subr.mxu0 %v994
        %1051 = vmatpush2.xpose.msra.mxu0 %v993
        %1052 = vmatprep.subr.mxu0 %v992
        %1053 = vmatpush2.xpose.msra.mxu0 %v991
        %1054 = vmatprep.subr.mxu0 %v990
        %1055 = vmatpush2.xpose.msra.mxu0 %v989
        %1056 = vmatprep.subr.mxu0 %v988
        %1057 = vmatpush2.xpose.msra.mxu0 %v987
        %1058 = vmatprep.subr.mxu0 %v986
        %1059 = vmatpush2.xpose.msra.mxu0 %v985
        %1060 = vmatprep.subr.mxu0 %v984
        %1061 = vmatpush2.xpose.msra.mxu0 %v983
        %1062 = vmatprep.subr.mxu0 %v982
        %1063 = vmatpush2.xpose.msra.mxu0 %v981
        %1064 = vmatprep.subr.mxu0 %v980
        %1065 = vmatpush2.xpose.msra.mxu0 %v979
        %1066 = vmatprep.subr.mxu0 %v978
        %1067 = vmatpush2.xpose.msra.mxu0 %v977
        %1068 = vmatprep.subr.mxu0 %v976
        %1069 = vmatpush2.xpose.msra.mxu0 %v975
        %1070 = vmatprep.subr.mxu0 %v974
        %1071 = vmatpush2.xpose.msra.mxu0 %v973
        %1072 = vmatprep.subr.mxu0 %v972
        %1073 = vmatpush2.xpose.msra.mxu0 %v971
        %1074 = vmatprep.subr.mxu0 %v970
        %1075 = vmatpush2.xpose.msra.mxu0 %v969
        %1076 = vmatprep.subr.mxu0 %v968
        %1077 = vmatpush2.xpose.msra.mxu0 %v967
        %1078 = vmatprep.mubr.f32.mxu0 %v1013
        %1079 = vmatmul.mubr.f32.gmra.mxu0 %v1012
        %v1080 = vpop.f32.mrf.mxu0
        %v1081 = vadd.f32 0.0, %v1080
        %v1082 = vpop.f32.mrf.mxu0
        %v1083 = vadd.f32 0.0, %v1082
        %1084 = vdwg.mxu0
        %v1085 = vld [vmem:[#allocation8] sm:$0xf]
        %v1086 = vld [vmem:[#allocation8 + $0x4] sm:$0xf]
        %v1087 = vld [vmem:[#allocation8 + $0x8] sm:$0xf]
        %v1088 = vld [vmem:[#allocation8 + $0xc] sm:$0xf]
        %v1089 = vld [vmem:[#allocation8 + $0x10] sm:$0xf]
        %v1090 = vld [vmem:[#allocation8 + $0x14] sm:$0xf]
        %v1091 = vld [vmem:[#allocation8 + $0x18] sm:$0xf]
        %v1092 = vld [vmem:[#allocation8 + $0x1c] sm:$0xf]
        %v1093 = vld [vmem:[#allocation8 + $0x20] sm:$0xf]
        %v1094 = vld [vmem:[#allocation8 + $0x24] sm:$0xf]
        %v1095 = vld [vmem:[#allocation8 + $0x28] sm:$0xf]
        %v1096 = vld [vmem:[#allocation8 + $0x2c] sm:$0xf]
        %v1097 = vld [vmem:[#allocation8 + $0x30] sm:$0xf]
        %v1098 = vld [vmem:[#allocation8 + $0x34] sm:$0xf]
        %v1099 = vld [vmem:[#allocation8 + $0x38] sm:$0xf]
        %v1100 = vld [vmem:[#allocation8 + $0x3c] sm:$0xf]
        %v1101 = vld [vmem:[%s4] sm:$0x1]
        %v1102 = vpack.c.bf16 %v1081, %v1081
        %v1104 = vlaneseq
        %v1105 = vshrl.u32 %v1104, 7
        %v1106 = vsub.s32 0, %v1105
        %v1107 = vrot.slane %v1101, %v1106
        %v1125 = vunpack.c.l.b16 %v1085
        %v1126 = vunpack.c.l.b16 %v1086
        %v1127 = vunpack.c.l.b16 %v1087
        %v1128 = vunpack.c.l.b16 %v1088
        %v1129 = vunpack.c.l.b16 %v1089
        %v1130 = vunpack.c.l.b16 %v1090
        %v1131 = vunpack.c.l.b16 %v1091
        %v1132 = vunpack.c.l.b16 %v1092
        %v1133 = vunpack.c.l.b16 %v1093
        %v1134 = vunpack.c.l.b16 %v1094
        %v1135 = vunpack.c.l.b16 %v1095
        %v1136 = vunpack.c.l.b16 %v1096
        %v1137 = vunpack.c.l.b16 %v1097
        %v1138 = vunpack.c.l.b16 %v1098
        %v1139 = vunpack.c.l.b16 %v1099
        %v1140 = vunpack.c.l.b16 %v1100
        %v1141 = vpack.c.b16 %v1126, %v1125
        %v1142 = vpack.c.b16 %v1128, %v1127
        %v1143 = vpack.c.b16 %v1130, %v1129
        %v1144 = vpack.c.b16 %v1132, %v1131
        %v1145 = vpack.c.b16 %v1134, %v1133
        %v1146 = vpack.c.b16 %v1136, %v1135
        %v1147 = vpack.c.b16 %v1138, %v1137
        %v1148 = vpack.c.b16 %v1140, %v1139
        %1157 = vmatprep.subr.bf16.mxu0 0
        %1158 = vmatpush1.bf16.msra.mxu0 %v1148
        %1159 = vmatprep.subr.bf16.mxu0 0
        %1160 = vmatpush1.bf16.msra.mxu0 %v1147
        %1161 = vmatprep.subr.bf16.mxu0 0
        %1162 = vmatpush1.bf16.msra.mxu0 %v1146
        %1163 = vmatprep.subr.bf16.mxu0 0
        %1164 = vmatpush1.bf16.msra.mxu0 %v1145
        %1165 = vmatprep.subr.bf16.mxu0 0
        %1166 = vmatpush1.bf16.msra.mxu0 %v1144
        %1167 = vmatprep.subr.bf16.mxu0 0
        %1168 = vmatpush1.bf16.msra.mxu0 %v1143
        %1169 = vmatprep.subr.bf16.mxu0 0
        %1170 = vmatpush1.bf16.msra.mxu0 %v1142
        %1171 = vmatprep.subr.bf16.mxu0 0
        %1172 = vmatpush1.bf16.msra.mxu0 %v1141
        %1173 = vmatprep.subr.bf16.mxu0 0
        %1174 = vmatpush2.bf16.msra.mxu0 0
        %1175 = vmatprep.subr.bf16.mxu0 0
        %1176 = vmatpush2.bf16.msra.mxu0 0
        %1177 = vmatprep.subr.bf16.mxu0 0
        %1178 = vmatpush2.bf16.msra.mxu0 0
        %1179 = vmatprep.subr.bf16.mxu0 0
        %1180 = vmatpush2.bf16.msra.mxu0 0
        %1181 = vmatprep.subr.bf16.mxu0 0
        %1182 = vmatpush2.bf16.msra.mxu0 0
        %1183 = vmatprep.subr.bf16.mxu0 0
        %1184 = vmatpush2.bf16.msra.mxu0 0
        %1185 = vmatprep.subr.bf16.mxu0 0
        %1186 = vmatpush2.bf16.msra.mxu0 0
        %1187 = vmatprep.subr.bf16.mxu0 0
        %1188 = vmatpush2.bf16.msra.mxu0 0
        %1189 = vmatprep.mubr.bf16.mxu0 0
        %1190 = vmatmul.mubr.bf16.gmra.mxu0 %v1102
        %v1191 = vpop.f32.mrf.mxu0
        %v1192 = vadd.f32 %v1107, %v1191
        %v1193 = vpop.f32.mrf.mxu0
        %v1194 = vpop.f32.mrf.mxu0
        %v1195 = vpop.f32.mrf.mxu0
        %1196 = vdwg.mxu0
        %v1197 = vmul.f32 %v1192, 0.01
        %v1198 = vmax.f32 %v1192, %v1197
        %v1199 = vld [vmem:[%s5] sm:$0x1]
        %v1200 = vld [vmem:[%s6] sm:$0x1]
        %v1201 = vrot.slane %v1198, 4
        %v1202 = vadd.f32 %v1198, %v1201
        %v1203 = vrot.slane %v1202, 2
        %v1204 = vadd.f32 %v1202, %v1203
        %v1205 = vrot.slane %v1204, 1
        %v1206 = vadd.f32 %v1204, %v1205
        %v1207 = vrcp.pop 8.0
        %v1208 = vmul.f32 %v1206, %v1207
        %v1209 = vsub.f32 %v1198, %v1208
        %v1210 = vmul.f32 %v1209, %v1209
        %v1211 = vrot.slane %v1210, 4
        %v1212 = vadd.f32 %v1210, %v1211
        %v1213 = vrot.slane %v1212, 2
        %v1214 = vadd.f32 %v1212, %v1213
        %v1215 = vrot.slane %v1214, 1
        %v1216 = vadd.f32 %v1214, %v1215
        %v1217 = vmul.f32 %v1216, %v1207
        %v1218 = vadd.f32 %v1217, 1e-05
        %v1219 = vrsqrt.pop %v1218
        %v1220 = vmul.f32 %v1209, %v1219
        %v1222 = vlaneseq
        %v1223 = vshrl.u32 %v1222, 7
        %v1224 = vsub.s32 0, %v1223
        %v1225 = vrot.slane %v1199, %v1224
        %v1227 = vmul.f32 %v1220, %v1225
        %v1229 = vlaneseq
        %v1230 = vshrl.u32 %v1229, 7
        %v1231 = vsub.s32 0, %v1230
        %v1232 = vrot.slane %v1200, %v1231
        %v1234 = vadd.f32 %v1227, %v1232
        %v1235 = vld [vmem:[#allocation10] sm:$0xf]
        %v1236 = vld [vmem:[#allocation10 + $0x4] sm:$0xf]
        %v1237 = vld [vmem:[#allocation10 + $0x8] sm:$0xf]
        %v1238 = vld [vmem:[#allocation10 + $0xc] sm:$0xf]
        %v1239 = vld [vmem:[#allocation10 + $0x10] sm:$0xf]
        %v1240 = vld [vmem:[#allocation10 + $0x14] sm:$0xf]
        %v1241 = vld [vmem:[#allocation10 + $0x18] sm:$0xf]
        %v1242 = vld [vmem:[#allocation10 + $0x1c] sm:$0xf]
        %v1243 = vld [vmem:[#allocation10 + $0x20] sm:$0xf]
        %v1244 = vld [vmem:[#allocation10 + $0x24] sm:$0xf]
        %v1245 = vld [vmem:[#allocation10 + $0x28] sm:$0xf]
        %v1246 = vld [vmem:[#allocation10 + $0x2c] sm:$0xf]
        %v1247 = vld [vmem:[#allocation10 + $0x30] sm:$0xf]
        %v1248 = vld [vmem:[#allocation10 + $0x34] sm:$0xf]
        %v1249 = vld [vmem:[#allocation10 + $0x38] sm:$0xf]
        %v1250 = vld [vmem:[#allocation10 + $0x3c] sm:$0xf]
        %v1251 = vld [vmem:[%s8] sm:$0x1]
        %v1252 = vpack.c.bf16 %v1234, %v1234
        %v1254 = vlaneseq
        %v1255 = vshrl.u32 %v1254, 7
        %v1256 = vsub.s32 0, %v1255
        %v1257 = vrot.slane %v1251, %v1256
        %v1275 = vunpack.c.l.b16 %v1235
        %v1276 = vunpack.c.l.b16 %v1236
        %v1277 = vunpack.c.l.b16 %v1237
        %v1278 = vunpack.c.l.b16 %v1238
        %v1279 = vunpack.c.l.b16 %v1239
        %v1280 = vunpack.c.l.b16 %v1240
        %v1281 = vunpack.c.l.b16 %v1241
        %v1282 = vunpack.c.l.b16 %v1242
        %v1283 = vunpack.c.l.b16 %v1243
        %v1284 = vunpack.c.l.b16 %v1244
        %v1285 = vunpack.c.l.b16 %v1245
        %v1286 = vunpack.c.l.b16 %v1246
        %v1287 = vunpack.c.l.b16 %v1247
        %v1288 = vunpack.c.l.b16 %v1248
        %v1289 = vunpack.c.l.b16 %v1249
        %v1290 = vunpack.c.l.b16 %v1250
        %v1291 = vpack.c.b16 %v1276, %v1275
        %v1292 = vpack.c.b16 %v1278, %v1277
        %v1293 = vpack.c.b16 %v1280, %v1279
        %v1294 = vpack.c.b16 %v1282, %v1281
        %v1295 = vpack.c.b16 %v1284, %v1283
        %v1296 = vpack.c.b16 %v1286, %v1285
        %v1297 = vpack.c.b16 %v1288, %v1287
        %v1298 = vpack.c.b16 %v1290, %v1289
        %1307 = vmatprep.subr.bf16.mxu0 0
        %1308 = vmatpush1.bf16.msra.mxu0 %v1298
        %1309 = vmatprep.subr.bf16.mxu0 0
        %1310 = vmatpush1.bf16.msra.mxu0 %v1297
        %1311 = vmatprep.subr.bf16.mxu0 0
        %1312 = vmatpush1.bf16.msra.mxu0 %v1296
        %1313 = vmatprep.subr.bf16.mxu0 0
        %1314 = vmatpush1.bf16.msra.mxu0 %v1295
        %1315 = vmatprep.subr.bf16.mxu0 0
        %1316 = vmatpush1.bf16.msra.mxu0 %v1294
        %1317 = vmatprep.subr.bf16.mxu0 0
        %1318 = vmatpush1.bf16.msra.mxu0 %v1293
        %1319 = vmatprep.subr.bf16.mxu0 0
        %1320 = vmatpush1.bf16.msra.mxu0 %v1292
        %1321 = vmatprep.subr.bf16.mxu0 0
        %1322 = vmatpush1.bf16.msra.mxu0 %v1291
        %1323 = vmatprep.subr.bf16.mxu0 0
        %1324 = vmatpush2.bf16.msra.mxu0 0
        %1325 = vmatprep.subr.bf16.mxu0 0
        %1326 = vmatpush2.bf16.msra.mxu0 0
        %1327 = vmatprep.subr.bf16.mxu0 0
        %1328 = vmatpush2.bf16.msra.mxu0 0
        %1329 = vmatprep.subr.bf16.mxu0 0
        %1330 = vmatpush2.bf16.msra.mxu0 0
        %1331 = vmatprep.subr.bf16.mxu0 0
        %1332 = vmatpush2.bf16.msra.mxu0 0
        %1333 = vmatprep.subr.bf16.mxu0 0
        %1334 = vmatpush2.bf16.msra.mxu0 0
        %1335 = vmatprep.subr.bf16.mxu0 0
        %1336 = vmatpush2.bf16.msra.mxu0 0
        %1337 = vmatprep.subr.bf16.mxu0 0
        %1338 = vmatpush2.bf16.msra.mxu0 0
        %1339 = vmatprep.mubr.bf16.mxu0 0
        %1340 = vmatmul.mubr.bf16.gmra.mxu0 %v1252
        %v1341 = vpop.f32.mrf.mxu0
        %v1342 = vadd.f32 %v1257, %v1341
        %v1343 = vpop.f32.mrf.mxu0
        %v1344 = vpop.f32.mrf.mxu0
        %v1345 = vpop.f32.mrf.mxu0
        %1346 = vdwg.mxu0
        %v1347 = vmul.f32 %v1342, 0.01
        %v1348 = vmax.f32 %v1342, %v1347
        %v1349 = vld [vmem:[%s9] sm:$0x1]
        %v1350 = vld [vmem:[%s10] sm:$0x1]
        %v1351 = vrot.slane %v1348, 4
        %v1352 = vadd.f32 %v1348, %v1351
        %v1353 = vrot.slane %v1352, 2
        %v1354 = vadd.f32 %v1352, %v1353
        %v1355 = vrot.slane %v1354, 1
        %v1356 = vadd.f32 %v1354, %v1355
        %v1357 = vmul.f32 %v1356, %v1207
        %v1358 = vsub.f32 %v1348, %v1357
        %v1359 = vmul.f32 %v1358, %v1358
        %v1360 = vrot.slane %v1359, 4
        %v1361 = vadd.f32 %v1359, %v1360
        %v1362 = vrot.slane %v1361, 2
        %v1363 = vadd.f32 %v1361, %v1362
        %v1364 = vrot.slane %v1363, 1
        %v1365 = vadd.f32 %v1363, %v1364
        %v1366 = vmul.f32 %v1365, %v1207
        %v1367 = vadd.f32 %v1366, 1e-05
        %v1368 = vrsqrt.pop %v1367
        %v1369 = vmul.f32 %v1358, %v1368
        %v1371 = vlaneseq
        %v1372 = vshrl.u32 %v1371, 7
        %v1373 = vsub.s32 0, %v1372
        %v1374 = vrot.slane %v1349, %v1373
        %v1376 = vmul.f32 %v1369, %v1374
        %v1378 = vlaneseq
        %v1379 = vshrl.u32 %v1378, 7
        %v1380 = vsub.s32 0, %v1379
        %v1381 = vrot.slane %v1350, %v1380
        %v1383 = vadd.f32 %v1376, %v1381
        %v1384 = vld [vmem:[#allocation11] sm:$0xf]
        %v1385 = vld [vmem:[#allocation11 + $0x4] sm:$0xf]
        %v1386 = vld [vmem:[#allocation11 + $0x8] sm:$0xf]
        %v1387 = vld [vmem:[#allocation11 + $0xc] sm:$0xf]
        %v1388 = vld [vmem:[#allocation11 + $0x10] sm:$0xf]
        %v1389 = vld [vmem:[#allocation11 + $0x14] sm:$0xf]
        %v1390 = vld [vmem:[#allocation11 + $0x18] sm:$0xf]
        %v1391 = vld [vmem:[#allocation11 + $0x1c] sm:$0xf]
        %v1392 = vld [vmem:[#allocation11 + $0x20] sm:$0xf]
        %v1393 = vld [vmem:[#allocation11 + $0x24] sm:$0xf]
        %v1394 = vld [vmem:[#allocation11 + $0x28] sm:$0xf]
        %v1395 = vld [vmem:[#allocation11 + $0x2c] sm:$0xf]
        %v1396 = vld [vmem:[#allocation11 + $0x30] sm:$0xf]
        %v1397 = vld [vmem:[#allocation11 + $0x34] sm:$0xf]
        %v1398 = vld [vmem:[#allocation11 + $0x38] sm:$0xf]
        %v1399 = vld [vmem:[#allocation11 + $0x3c] sm:$0xf]
        %v1400 = vld [vmem:[%s12] sm:$0x1]
        %v1401 = vpack.c.bf16 %v1383, %v1383
        %v1403 = vlaneseq
        %v1404 = vshrl.u32 %v1403, 7
        %v1405 = vsub.s32 0, %v1404
        %v1406 = vrot.slane %v1400, %v1405
        %v1424 = vunpack.c.l.b16 %v1384
        %v1425 = vunpack.c.l.b16 %v1385
        %v1426 = vunpack.c.l.b16 %v1386
        %v1427 = vunpack.c.l.b16 %v1387
        %v1428 = vunpack.c.l.b16 %v1388
        %v1429 = vunpack.c.l.b16 %v1389
        %v1430 = vunpack.c.l.b16 %v1390
        %v1431 = vunpack.c.l.b16 %v1391
        %v1432 = vunpack.c.l.b16 %v1392
        %v1433 = vunpack.c.l.b16 %v1393
        %v1434 = vunpack.c.l.b16 %v1394
        %v1435 = vunpack.c.l.b16 %v1395
        %v1436 = vunpack.c.l.b16 %v1396
        %v1437 = vunpack.c.l.b16 %v1397
        %v1438 = vunpack.c.l.b16 %v1398
        %v1439 = vunpack.c.l.b16 %v1399
        %v1440 = vpack.c.b16 %v1425, %v1424
        %v1441 = vpack.c.b16 %v1427, %v1426
        %v1442 = vpack.c.b16 %v1429, %v1428
        %v1443 = vpack.c.b16 %v1431, %v1430
        %v1444 = vpack.c.b16 %v1433, %v1432
        %v1445 = vpack.c.b16 %v1435, %v1434
        %v1446 = vpack.c.b16 %v1437, %v1436
        %v1447 = vpack.c.b16 %v1439, %v1438
        %1456 = vmatprep.subr.bf16.mxu0 0
        %1457 = vmatpush1.bf16.msra.mxu0 %v1447
        %1458 = vmatprep.subr.bf16.mxu0 0
        %1459 = vmatpush1.bf16.msra.mxu0 %v1446
        %1460 = vmatprep.subr.bf16.mxu0 0
        %1461 = vmatpush1.bf16.msra.mxu0 %v1445
        %1462 = vmatprep.subr.bf16.mxu0 0
        %1463 = vmatpush1.bf16.msra.mxu0 %v1444
        %1464 = vmatprep.subr.bf16.mxu0 0
        %1465 = vmatpush1.bf16.msra.mxu0 %v1443
        %1466 = vmatprep.subr.bf16.mxu0 0
        %1467 = vmatpush1.bf16.msra.mxu0 %v1442
        %1468 = vmatprep.subr.bf16.mxu0 0
        %1469 = vmatpush1.bf16.msra.mxu0 %v1441
        %1470 = vmatprep.subr.bf16.mxu0 0
        %1471 = vmatpush1.bf16.msra.mxu0 %v1440
        %1472 = vmatprep.subr.bf16.mxu0 0
        %1473 = vmatpush2.bf16.msra.mxu0 0
        %1474 = vmatprep.subr.bf16.mxu0 0
        %1475 = vmatpush2.bf16.msra.mxu0 0
        %1476 = vmatprep.subr.bf16.mxu0 0
        %1477 = vmatpush2.bf16.msra.mxu0 0
        %1478 = vmatprep.subr.bf16.mxu0 0
        %1479 = vmatpush2.bf16.msra.mxu0 0
        %1480 = vmatprep.subr.bf16.mxu0 0
        %1481 = vmatpush2.bf16.msra.mxu0 0
        %1482 = vmatprep.subr.bf16.mxu0 0
        %1483 = vmatpush2.bf16.msra.mxu0 0
        %1484 = vmatprep.subr.bf16.mxu0 0
        %1485 = vmatpush2.bf16.msra.mxu0 0
        %1486 = vmatprep.subr.bf16.mxu0 0
        %1487 = vmatpush2.bf16.msra.mxu0 0
        %1488 = vmatprep.mubr.bf16.mxu0 0
        %1489 = vmatmul.mubr.bf16.gmra.mxu0 %v1401
        %v1490 = vpop.f32.mrf.mxu0
        %v1491 = vadd.f32 %v1406, %v1490
        %v1492 = vpop.f32.mrf.mxu0
        %v1493 = vpop.f32.mrf.mxu0
        %v1494 = vpop.f32.mrf.mxu0
        %1495 = vdwg.mxu0
        %v1496 = vld [vmem:[%s13] sm:$0x1]
        %v1497 = vld [vmem:[%s14] sm:$0x1]
        %v1498 = vrot.slane %v1491, 4
        %v1499 = vadd.f32 %v1491, %v1498
        %v1500 = vrot.slane %v1499, 2
        %v1501 = vadd.f32 %v1499, %v1500
        %v1502 = vrot.slane %v1501, 1
        %v1503 = vadd.f32 %v1501, %v1502
        %v1504 = vmul.f32 %v1503, %v1207
        %v1505 = vsub.f32 %v1491, %v1504
        %v1506 = vmul.f32 %v1505, %v1505
        %v1507 = vrot.slane %v1506, 4
        %v1508 = vadd.f32 %v1506, %v1507
        %v1509 = vrot.slane %v1508, 2
        %v1510 = vadd.f32 %v1508, %v1509
        %v1511 = vrot.slane %v1510, 1
        %v1512 = vadd.f32 %v1510, %v1511
        %v1513 = vmul.f32 %v1512, %v1207
        %v1514 = vadd.f32 %v1513, 1e-05
        %v1515 = vrsqrt.pop %v1514
        %v1516 = vmul.f32 %v1505, %v1515
        %v1518 = vlaneseq
        %v1519 = vshrl.u32 %v1518, 7
        %v1520 = vsub.s32 0, %v1519
        %v1521 = vrot.slane %v1496, %v1520
        %v1523 = vmul.f32 %v1516, %v1521
        %v1525 = vlaneseq
        %v1526 = vshrl.u32 %v1525, 7
        %v1527 = vsub.s32 0, %v1526
        %v1528 = vrot.slane %v1497, %v1527
        %v1530 = vadd.f32 %v1523, %v1528
        %1531 = vst [vmem:[%s932] sm:$0xff] %v1530
        %v1532 = vld [vmem:[#allocation13] sm:$0xf]
        %v1533 = vld [vmem:[#allocation13 + $0x4] sm:$0xf]
        %v1534 = vld [vmem:[#allocation13 + $0x8] sm:$0xf]
        %v1535 = vld [vmem:[#allocation13 + $0xc] sm:$0xf]
        %v1536 = vld [vmem:[#allocation13 + $0x10] sm:$0xf]
        %v1537 = vld [vmem:[#allocation13 + $0x14] sm:$0xf]
        %v1538 = vld [vmem:[#allocation13 + $0x18] sm:$0xf]
        %v1539 = vld [vmem:[#allocation13 + $0x1c] sm:$0xf]
        %v1540 = vld [vmem:[#allocation13 + $0x20] sm:$0xf]
        %v1541 = vld [vmem:[#allocation13 + $0x24] sm:$0xf]
        %v1542 = vld [vmem:[#allocation13 + $0x28] sm:$0xf]
        %v1543 = vld [vmem:[#allocation13 + $0x2c] sm:$0xf]
        %v1544 = vld [vmem:[#allocation13 + $0x30] sm:$0xf]
        %v1545 = vld [vmem:[#allocation13 + $0x34] sm:$0xf]
        %v1546 = vld [vmem:[#allocation13 + $0x38] sm:$0xf]
        %v1547 = vld [vmem:[#allocation13 + $0x3c] sm:$0xf]
        %v1548 = vld [vmem:[%s16] sm:$0x1]
        %v1549 = vpack.c.bf16 %v1530, %v1530
        %v1551 = vlaneseq
        %v1552 = vshrl.u32 %v1551, 7
        %v1553 = vsub.s32 0, %v1552
        %v1554 = vrot.slane %v1548, %v1553
        %v1572 = vunpack.c.l.b16 %v1532
        %v1573 = vunpack.c.l.b16 %v1533
        %v1574 = vunpack.c.l.b16 %v1534
        %v1575 = vunpack.c.l.b16 %v1535
        %v1576 = vunpack.c.l.b16 %v1536
        %v1577 = vunpack.c.l.b16 %v1537
        %v1578 = vunpack.c.l.b16 %v1538
        %v1579 = vunpack.c.l.b16 %v1539
        %v1580 = vunpack.c.l.b16 %v1540
        %v1581 = vunpack.c.l.b16 %v1541
        %v1582 = vunpack.c.l.b16 %v1542
        %v1583 = vunpack.c.l.b16 %v1543
        %v1584 = vunpack.c.l.b16 %v1544
        %v1585 = vunpack.c.l.b16 %v1545
        %v1586 = vunpack.c.l.b16 %v1546
        %v1587 = vunpack.c.l.b16 %v1547
        %v1588 = vpack.c.b16 %v1573, %v1572
        %v1589 = vpack.c.b16 %v1575, %v1574
        %v1590 = vpack.c.b16 %v1577, %v1576
        %v1591 = vpack.c.b16 %v1579, %v1578
        %v1592 = vpack.c.b16 %v1581, %v1580
        %v1593 = vpack.c.b16 %v1583, %v1582
        %v1594 = vpack.c.b16 %v1585, %v1584
        %v1595 = vpack.c.b16 %v1587, %v1586
        %1604 = vmatprep.subr.bf16.mxu0 0
        %1605 = vmatpush1.bf16.msra.mxu0 %v1595
        %1606 = vmatprep.subr.bf16.mxu0 0
        %1607 = vmatpush1.bf16.msra.mxu0 %v1594
        %1608 = vmatprep.subr.bf16.mxu0 0
        %1609 = vmatpush1.bf16.msra.mxu0 %v1593
        %1610 = vmatprep.subr.bf16.mxu0 0
        %1611 = vmatpush1.bf16.msra.mxu0 %v1592
        %1612 = vmatprep.subr.bf16.mxu0 0
        %1613 = vmatpush1.bf16.msra.mxu0 %v1591
        %1614 = vmatprep.subr.bf16.mxu0 0
        %1615 = vmatpush1.bf16.msra.mxu0 %v1590
        %1616 = vmatprep.subr.bf16.mxu0 0
        %1617 = vmatpush1.bf16.msra.mxu0 %v1589
        %1618 = vmatprep.subr.bf16.mxu0 0
        %1619 = vmatpush1.bf16.msra.mxu0 %v1588
        %1620 = vmatprep.subr.bf16.mxu0 0
        %1621 = vmatpush2.bf16.msra.mxu0 0
        %1622 = vmatprep.subr.bf16.mxu0 0
        %1623 = vmatpush2.bf16.msra.mxu0 0
        %1624 = vmatprep.subr.bf16.mxu0 0
        %1625 = vmatpush2.bf16.msra.mxu0 0
        %1626 = vmatprep.subr.bf16.mxu0 0
        %1627 = vmatpush2.bf16.msra.mxu0 0
        %1628 = vmatprep.subr.bf16.mxu0 0
        %1629 = vmatpush2.bf16.msra.mxu0 0
        %1630 = vmatprep.subr.bf16.mxu0 0
        %1631 = vmatpush2.bf16.msra.mxu0 0
        %1632 = vmatprep.subr.bf16.mxu0 0
        %1633 = vmatpush2.bf16.msra.mxu0 0
        %1634 = vmatprep.subr.bf16.mxu0 0
        %1635 = vmatpush2.bf16.msra.mxu0 0
        %1636 = vmatprep.mubr.bf16.mxu0 0
        %1637 = vmatmul.mubr.bf16.gmra.mxu0 %v1549
        %v1638 = vpop.f32.mrf.mxu0
        %v1639 = vadd.f32 %v1554, %v1638
        %v1640 = vpop.f32.mrf.mxu0
        %v1641 = vpop.f32.mrf.mxu0
        %v1642 = vpop.f32.mrf.mxu0
        %1643 = vdwg.mxu0
        %v1644 = vmul.f32 %v1639, 0.01
        %v1645 = vmax.f32 %v1639, %v1644
        %v1646 = vld [vmem:[%s17] sm:$0x1]
        %v1647 = vld [vmem:[%s18] sm:$0x1]
        %v1648 = vrot.slane %v1645, 4
        %v1649 = vadd.f32 %v1645, %v1648
        %v1650 = vrot.slane %v1649, 2
        %v1651 = vadd.f32 %v1649, %v1650
        %v1652 = vrot.slane %v1651, 1
        %v1653 = vadd.f32 %v1651, %v1652
        %v1654 = vmul.f32 %v1653, %v1207
        %v1655 = vsub.f32 %v1645, %v1654
        %v1656 = vmul.f32 %v1655, %v1655
        %v1657 = vrot.slane %v1656, 4
        %v1658 = vadd.f32 %v1656, %v1657
        %v1659 = vrot.slane %v1658, 2
        %v1660 = vadd.f32 %v1658, %v1659
        %v1661 = vrot.slane %v1660, 1
        %v1662 = vadd.f32 %v1660, %v1661
        %v1663 = vmul.f32 %v1662, %v1207
        %v1664 = vadd.f32 %v1663, 1e-05
        %v1665 = vrsqrt.pop %v1664
        %v1666 = vmul.f32 %v1655, %v1665
        %v1668 = vlaneseq
        %v1669 = vshrl.u32 %v1668, 7
        %v1670 = vsub.s32 0, %v1669
        %v1671 = vrot.slane %v1646, %v1670
        %v1673 = vmul.f32 %v1666, %v1671
        %v1675 = vlaneseq
        %v1676 = vshrl.u32 %v1675, 7
        %v1677 = vsub.s32 0, %v1676
        %v1678 = vrot.slane %v1647, %v1677
        %v1680 = vadd.f32 %v1673, %v1678
        %v1681 = vld [vmem:[#allocation14] sm:$0xf]
        %v1682 = vld [vmem:[#allocation14 + $0x4] sm:$0xf]
        %v1683 = vld [vmem:[#allocation14 + $0x8] sm:$0xf]
        %v1684 = vld [vmem:[#allocation14 + $0xc] sm:$0xf]
        %v1685 = vld [vmem:[#allocation14 + $0x10] sm:$0xf]
        %v1686 = vld [vmem:[#allocation14 + $0x14] sm:$0xf]
        %v1687 = vld [vmem:[#allocation14 + $0x18] sm:$0xf]
        %v1688 = vld [vmem:[#allocation14 + $0x1c] sm:$0xf]
        %v1689 = vld [vmem:[#allocation14 + $0x20] sm:$0xf]
        %v1690 = vld [vmem:[#allocation14 + $0x24] sm:$0xf]
        %v1691 = vld [vmem:[#allocation14 + $0x28] sm:$0xf]
        %v1692 = vld [vmem:[#allocation14 + $0x2c] sm:$0xf]
        %v1693 = vld [vmem:[#allocation14 + $0x30] sm:$0xf]
        %v1694 = vld [vmem:[#allocation14 + $0x34] sm:$0xf]
        %v1695 = vld [vmem:[#allocation14 + $0x38] sm:$0xf]
        %v1696 = vld [vmem:[#allocation14 + $0x3c] sm:$0xf]
        %v1697 = vld [vmem:[%s20] sm:$0x1]
        %v1698 = vpack.c.bf16 %v1680, %v1680
        %v1700 = vlaneseq
        %v1701 = vshrl.u32 %v1700, 7
        %v1702 = vsub.s32 0, %v1701
        %v1703 = vrot.slane %v1697, %v1702
        %v1721 = vunpack.c.l.b16 %v1681
        %v1722 = vunpack.c.l.b16 %v1682
        %v1723 = vunpack.c.l.b16 %v1683
        %v1724 = vunpack.c.l.b16 %v1684
        %v1725 = vunpack.c.l.b16 %v1685
        %v1726 = vunpack.c.l.b16 %v1686
        %v1727 = vunpack.c.l.b16 %v1687
        %v1728 = vunpack.c.l.b16 %v1688
        %v1729 = vunpack.c.l.b16 %v1689
        %v1730 = vunpack.c.l.b16 %v1690
        %v1731 = vunpack.c.l.b16 %v1691
        %v1732 = vunpack.c.l.b16 %v1692
        %v1733 = vunpack.c.l.b16 %v1693
        %v1734 = vunpack.c.l.b16 %v1694
        %v1735 = vunpack.c.l.b16 %v1695
        %v1736 = vunpack.c.l.b16 %v1696
        %v1737 = vpack.c.b16 %v1722, %v1721
        %v1738 = vpack.c.b16 %v1724, %v1723
        %v1739 = vpack.c.b16 %v1726, %v1725
        %v1740 = vpack.c.b16 %v1728, %v1727
        %v1741 = vpack.c.b16 %v1730, %v1729
        %v1742 = vpack.c.b16 %v1732, %v1731
        %v1743 = vpack.c.b16 %v1734, %v1733
        %v1744 = vpack.c.b16 %v1736, %v1735
        %1753 = vmatprep.subr.bf16.mxu0 0
        %1754 = vmatpush1.bf16.msra.mxu0 %v1744
        %1755 = vmatprep.subr.bf16.mxu0 0
        %1756 = vmatpush1.bf16.msra.mxu0 %v1743
        %1757 = vmatprep.subr.bf16.mxu0 0
        %1758 = vmatpush1.bf16.msra.mxu0 %v1742
        %1759 = vmatprep.subr.bf16.mxu0 0
        %1760 = vmatpush1.bf16.msra.mxu0 %v1741
        %1761 = vmatprep.subr.bf16.mxu0 0
        %1762 = vmatpush1.bf16.msra.mxu0 %v1740
        %1763 = vmatprep.subr.bf16.mxu0 0
        %1764 = vmatpush1.bf16.msra.mxu0 %v1739
        %1765 = vmatprep.subr.bf16.mxu0 0
        %1766 = vmatpush1.bf16.msra.mxu0 %v1738
        %1767 = vmatprep.subr.bf16.mxu0 0
        %1768 = vmatpush1.bf16.msra.mxu0 %v1737
        %1769 = vmatprep.subr.bf16.mxu0 0
        %1770 = vmatpush2.bf16.msra.mxu0 0
        %1771 = vmatprep.subr.bf16.mxu0 0
        %1772 = vmatpush2.bf16.msra.mxu0 0
        %1773 = vmatprep.subr.bf16.mxu0 0
        %1774 = vmatpush2.bf16.msra.mxu0 0
        %1775 = vmatprep.subr.bf16.mxu0 0
        %1776 = vmatpush2.bf16.msra.mxu0 0
        %1777 = vmatprep.subr.bf16.mxu0 0
        %1778 = vmatpush2.bf16.msra.mxu0 0
        %1779 = vmatprep.subr.bf16.mxu0 0
        %1780 = vmatpush2.bf16.msra.mxu0 0
        %1781 = vmatprep.subr.bf16.mxu0 0
        %1782 = vmatpush2.bf16.msra.mxu0 0
        %1783 = vmatprep.subr.bf16.mxu0 0
        %1784 = vmatpush2.bf16.msra.mxu0 0
        %1785 = vmatprep.mubr.bf16.mxu0 0
        %1786 = vmatmul.mubr.bf16.gmra.mxu0 %v1698
        %v1787 = vpop.f32.mrf.mxu0
        %v1788 = vadd.f32 %v1703, %v1787
        %v1789 = vpop.f32.mrf.mxu0
        %v1790 = vpop.f32.mrf.mxu0
        %v1791 = vpop.f32.mrf.mxu0
        %1792 = vdwg.mxu0
        %v1793 = vmul.f32 %v1788, 0.01
        %v1794 = vmax.f32 %v1788, %v1793
        %v1795 = vld [vmem:[%s21] sm:$0x1]
        %v1796 = vld [vmem:[%s22] sm:$0x1]
        %v1797 = vrot.slane %v1794, 4
        %v1798 = vadd.f32 %v1794, %v1797
        %v1799 = vrot.slane %v1798, 2
        %v1800 = vadd.f32 %v1798, %v1799
        %v1801 = vrot.slane %v1800, 1
        %v1802 = vadd.f32 %v1800, %v1801
        %v1803 = vmul.f32 %v1802, %v1207
        %v1804 = vsub.f32 %v1794, %v1803
        %v1805 = vmul.f32 %v1804, %v1804
        %v1806 = vrot.slane %v1805, 4
        %v1807 = vadd.f32 %v1805, %v1806
        %v1808 = vrot.slane %v1807, 2
        %v1809 = vadd.f32 %v1807, %v1808
        %v1810 = vrot.slane %v1809, 1
        %v1811 = vadd.f32 %v1809, %v1810
        %v1812 = vmul.f32 %v1811, %v1207
        %v1813 = vadd.f32 %v1812, 1e-05
        %v1814 = vrsqrt.pop %v1813
        %v1815 = vmul.f32 %v1804, %v1814
        %v1817 = vlaneseq
        %v1818 = vshrl.u32 %v1817, 7
        %v1819 = vsub.s32 0, %v1818
        %v1820 = vrot.slane %v1795, %v1819
        %v1822 = vmul.f32 %v1815, %v1820
        %v1824 = vlaneseq
        %v1825 = vshrl.u32 %v1824, 7
        %v1826 = vsub.s32 0, %v1825
        %v1827 = vrot.slane %v1796, %v1826
        %v1829 = vadd.f32 %v1822, %v1827
        %v1830 = vld [vmem:[#allocation16] sm:$0xf]
        %v1831 = vld [vmem:[#allocation16 + $0x4] sm:$0xf]
        %v1832 = vld [vmem:[#allocation16 + $0x8] sm:$0xf]
        %v1833 = vld [vmem:[#allocation16 + $0xc] sm:$0xf]
        %v1834 = vld [vmem:[#allocation16 + $0x10] sm:$0xf]
        %v1835 = vld [vmem:[#allocation16 + $0x14] sm:$0xf]
        %v1836 = vld [vmem:[#allocation16 + $0x18] sm:$0xf]
        %v1837 = vld [vmem:[#allocation16 + $0x1c] sm:$0xf]
        %v1838 = vld [vmem:[#allocation16 + $0x20] sm:$0xf]
        %v1839 = vld [vmem:[#allocation16 + $0x24] sm:$0xf]
        %v1840 = vld [vmem:[#allocation16 + $0x28] sm:$0xf]
        %v1841 = vld [vmem:[#allocation16 + $0x2c] sm:$0xf]
        %v1842 = vld [vmem:[#allocation16 + $0x30] sm:$0xf]
        %v1843 = vld [vmem:[#allocation16 + $0x34] sm:$0xf]
        %v1844 = vld [vmem:[#allocation16 + $0x38] sm:$0xf]
        %v1845 = vld [vmem:[#allocation16 + $0x3c] sm:$0xf]
        %v1846 = vld [vmem:[%s24] sm:$0x1]
        %v1847 = vpack.c.bf16 %v1829, %v1829
        %v1849 = vlaneseq
        %v1850 = vshrl.u32 %v1849, 7
        %v1851 = vsub.s32 0, %v1850
        %v1852 = vrot.slane %v1846, %v1851
        %v1870 = vunpack.c.l.b16 %v1830
        %v1871 = vunpack.c.l.b16 %v1831
        %v1872 = vunpack.c.l.b16 %v1832
        %v1873 = vunpack.c.l.b16 %v1833
        %v1874 = vunpack.c.l.b16 %v1834
        %v1875 = vunpack.c.l.b16 %v1835
        %v1876 = vunpack.c.l.b16 %v1836
        %v1877 = vunpack.c.l.b16 %v1837
        %v1878 = vunpack.c.l.b16 %v1838
        %v1879 = vunpack.c.l.b16 %v1839
        %v1880 = vunpack.c.l.b16 %v1840
        %v1881 = vunpack.c.l.b16 %v1841
        %v1882 = vunpack.c.l.b16 %v1842
        %v1883 = vunpack.c.l.b16 %v1843
        %v1884 = vunpack.c.l.b16 %v1844
        %v1885 = vunpack.c.l.b16 %v1845
        %v1886 = vpack.c.b16 %v1871, %v1870
        %v1887 = vpack.c.b16 %v1873, %v1872
        %v1888 = vpack.c.b16 %v1875, %v1874
        %v1889 = vpack.c.b16 %v1877, %v1876
        %v1890 = vpack.c.b16 %v1879, %v1878
        %v1891 = vpack.c.b16 %v1881, %v1880
        %v1892 = vpack.c.b16 %v1883, %v1882
        %v1893 = vpack.c.b16 %v1885, %v1884
        %1902 = vmatprep.subr.bf16.mxu0 0
        %1903 = vmatpush1.bf16.msra.mxu0 %v1893
        %1904 = vmatprep.subr.bf16.mxu0 0
        %1905 = vmatpush1.bf16.msra.mxu0 %v1892
        %1906 = vmatprep.subr.bf16.mxu0 0
        %1907 = vmatpush1.bf16.msra.mxu0 %v1891
        %1908 = vmatprep.subr.bf16.mxu0 0
        %1909 = vmatpush1.bf16.msra.mxu0 %v1890
        %1910 = vmatprep.subr.bf16.mxu0 0
        %1911 = vmatpush1.bf16.msra.mxu0 %v1889
        %1912 = vmatprep.subr.bf16.mxu0 0
        %1913 = vmatpush1.bf16.msra.mxu0 %v1888
        %1914 = vmatprep.subr.bf16.mxu0 0
        %1915 = vmatpush1.bf16.msra.mxu0 %v1887
        %1916 = vmatprep.subr.bf16.mxu0 0
        %1917 = vmatpush1.bf16.msra.mxu0 %v1886
        %1918 = vmatprep.subr.bf16.mxu0 0
        %1919 = vmatpush2.bf16.msra.mxu0 0
        %1920 = vmatprep.subr.bf16.mxu0 0
        %1921 = vmatpush2.bf16.msra.mxu0 0
        %1922 = vmatprep.subr.bf16.mxu0 0
        %1923 = vmatpush2.bf16.msra.mxu0 0
        %1924 = vmatprep.subr.bf16.mxu0 0
        %1925 = vmatpush2.bf16.msra.mxu0 0
        %1926 = vmatprep.subr.bf16.mxu0 0
        %1927 = vmatpush2.bf16.msra.mxu0 0
        %1928 = vmatprep.subr.bf16.mxu0 0
        %1929 = vmatpush2.bf16.msra.mxu0 0
        %1930 = vmatprep.subr.bf16.mxu0 0
        %1931 = vmatpush2.bf16.msra.mxu0 0
        %1932 = vmatprep.subr.bf16.mxu0 0
        %1933 = vmatpush2.bf16.msra.mxu0 0
        %1934 = vmatprep.mubr.bf16.mxu0 0
        %1935 = vmatmul.mubr.bf16.gmra.mxu0 %v1847
        %v1936 = vpop.f32.mrf.mxu0
        %v1937 = vadd.f32 %v1852, %v1936
        %v1938 = vpop.f32.mrf.mxu0
        %v1939 = vpop.f32.mrf.mxu0
        %v1940 = vpop.f32.mrf.mxu0
        %1941 = vdwg.mxu0
        %v1942 = vlaneseq
        %v1943 = vand.u32 %v1942, 127
        %vm1944 = vcmp.ge.s32.totalorder %v1943, 32
        %v1945 = vsel %vm1944, %v1081, 0.0
        %v1946 = vadd.f32 %v1937, %v1945
        %1947 = vmatprep.subr.mxu0 %v966
        %1948 = vmatpush1.msra.mxu0 %v965
        %1949 = vmatprep.subr.mxu0 %v964
        %1950 = vmatpush1.msra.mxu0 %v963
        %1951 = vmatprep.subr.mxu0 %v962
        %1952 = vmatpush1.msra.mxu0 %v961
        %1953 = vmatprep.subr.mxu0 %v960
        %1954 = vmatpush1.msra.mxu0 %v959
        %1955 = vmatprep.subr.mxu0 %v958
        %1956 = vmatpush1.msra.mxu0 %v957
        %1957 = vmatprep.subr.mxu0 %v956
        %1958 = vmatpush1.msra.mxu0 %v955
        %1959 = vmatprep.subr.mxu0 %v954
        %1960 = vmatpush1.msra.mxu0 %v953
        %1961 = vmatprep.subr.mxu0 %v952
        %1962 = vmatpush1.msra.mxu0 %v951
        %1963 = vmatprep.subr.mxu0 %v950
        %1964 = vmatpush1.msra.mxu0 %v949
        %1965 = vmatprep.subr.mxu0 %v948
        %1966 = vmatpush1.msra.mxu0 %v947
        %1967 = vmatprep.subr.mxu0 %v946
        %1968 = vmatpush1.msra.mxu0 %v945
        %1969 = vmatprep.subr.mxu0 %v944
        %1970 = vmatpush1.msra.mxu0 %v943
        %1971 = vmatprep.subr.mxu0 %v942
        %1972 = vmatpush1.msra.mxu0 %v941
        %1973 = vmatprep.subr.mxu0 %v940
        %1974 = vmatpush1.msra.mxu0 %v939
        %1975 = vmatprep.subr.mxu0 %v938
        %1976 = vmatpush1.msra.mxu0 %v937
        %1977 = vmatprep.subr.mxu0 %v936
        %1978 = vmatpush1.msra.mxu0 %v935
        %1979 = vmatprep.subr.mxu0 %v998
        %1980 = vmatpush2.msra.mxu0 %v997
        %1981 = vmatprep.subr.mxu0 %v996
        %1982 = vmatpush2.msra.mxu0 %v995
        %1983 = vmatprep.subr.mxu0 %v994
        %1984 = vmatpush2.msra.mxu0 %v993
        %1985 = vmatprep.subr.mxu0 %v992
        %1986 = vmatpush2.msra.mxu0 %v991
        %1987 = vmatprep.subr.mxu0 %v990
        %1988 = vmatpush2.msra.mxu0 %v989
        %1989 = vmatprep.subr.mxu0 %v988
        %1990 = vmatpush2.msra.mxu0 %v987
        %1991 = vmatprep.subr.mxu0 %v986
        %1992 = vmatpush2.msra.mxu0 %v985
        %1993 = vmatprep.subr.mxu0 %v984
        %1994 = vmatpush2.msra.mxu0 %v983
        %1995 = vmatprep.subr.mxu0 %v982
        %1996 = vmatpush2.msra.mxu0 %v981
        %1997 = vmatprep.subr.mxu0 %v980
        %1998 = vmatpush2.msra.mxu0 %v979
        %1999 = vmatprep.subr.mxu0 %v978
        %2000 = vmatpush2.msra.mxu0 %v977
        %2001 = vmatprep.subr.mxu0 %v976
        %2002 = vmatpush2.msra.mxu0 %v975
        %2003 = vmatprep.subr.mxu0 %v974
        %2004 = vmatpush2.msra.mxu0 %v973
        %2005 = vmatprep.subr.mxu0 %v972
        %2006 = vmatpush2.msra.mxu0 %v971
        %2007 = vmatprep.subr.mxu0 %v970
        %2008 = vmatpush2.msra.mxu0 %v969
        %2009 = vmatprep.subr.mxu0 %v968
        %2010 = vmatpush2.msra.mxu0 %v967
        %2011 = vmatprep.mubr.f32.mxu0 %v1083
        %2012 = vmatmul.mubr.f32.gmra.mxu0 %v1946
        %v2013 = vpop.f32.mrf.mxu0
        %v2014 = vadd.f32 %v1005, %v2013
        %v2015 = vpop.f32.mrf.mxu0
        %v2016 = vadd.f32 %v1009, %v2015
        %2017 = vdwg.mxu0
        %2018 = vst [vmem:[%s925] sm:$0xff] %v2014
        %2019 = vst [vmem:[%s925 + $0x8] sm:$0xff] %v2016
        %s2020 = sand.u32 %s589, 1
        %s2021 = scalar_lea.sflag [#allocation4], %s2020
        %s2022 = sand.u32 %s589, 1
        %s2023 = smul.addr %s2022, 16
        %s2024 = scalar_lea.vmem [#allocation17], %s2023
        %s2025 = sand.u32 %s615, 1
        %s2026 = scalar_lea.sflag [#allocation19], %s2025
        %s2027 = sand.u32 %s615, 1
        %s2028 = smul.addr %s2027, 8
        %s2029 = scalar_lea.vmem [#allocation18], %s2028
        // Predicated region
        $region157: #{tpu_custom_call.1} parent=119 // pred_check
          %p2030 = pneg %p599
        $region158: #{tpu_custom_call.1} parent=119 // pred_check_branch
          %2032 = sbr.rel (%p2030) target = $region160
        $region159: #{tpu_custom_call.1} parent=119 // pred_region
          %s2034 = ssub.s32 256, 256
          %2035 = vsyncadd %s2021, %s2034
          %s2036 = smul.addr %s51, 2
          %s2037 = smul.addr %s2036, 128
          %s2038 = scalar_lea.hbm %s25, %s2037
          %s2040 = sshll.u32 %s2024, 4
          %s2041 = int_to_ptr.vmem [resolvable:$true] %s2040
          %2043 = dma.vmem_to_hbm [thread:$0]  %s2041, 256, %s2038, %s2021
        $region160: #{tpu_custom_call.1} parent=119 // pred_fallthru
          _
        // Predicated region
        $region161: #{tpu_custom_call.1} parent=119 // pred_check
          %p2044 = pneg %p625
        $region162: #{tpu_custom_call.1} parent=119 // pred_check_branch
          %2046 = sbr.rel (%p2044) target = $region164
        $region163: #{tpu_custom_call.1} parent=119 // pred_region
          %s2048 = ssub.s32 128, 128
          %2049 = vsyncadd %s2026, %s2048
          %s2050 = smul.addr %s51, 128
          %s2051 = scalar_lea.hbm %s26, %s2050
          %s2053 = sshll.u32 %s2029, 4
          %s2054 = int_to_ptr.vmem [resolvable:$true] %s2053
          %2056 = dma.vmem_to_hbm [thread:$0]  %s2054, 128, %s2051, %s2026
        $region164: #{tpu_custom_call.1} parent=119 // pred_fallthru
          _
      $region120: #{tpu_custom_call.1} parent=5 // pred_fallthru
        _
      %p2057 = scmp.le.s32.totalorder 2, %s46
      // Predicated region
      $region165: #{tpu_custom_call.1} parent=5 // pred_check
        %p2058 = pneg %p2057
      $region166: #{tpu_custom_call.1} parent=5 // pred_check_branch
        %2060 = sbr.rel (%p2058) target = $region168
      $region167: #{tpu_custom_call.1} parent=5 // pred_region
        %s2061 = ssub.s32 %s46, 2
        // Predicated region
        $region169: #{tpu_custom_call.1} parent=167 // pred_check
          %p2062 = pneg %p605
        $region170: #{tpu_custom_call.1} parent=167 // pred_check_branch
          %2064 = sbr.rel (%p2062) target = $region172
        $region171: #{tpu_custom_call.1} parent=167 // pred_region
          %s2065 = sand.u32 %s590, 1
          %s2066 = scalar_lea.sflag [#allocation4], %s2065
          %s2067 = sand.u32 %s590, 1
          %s2068 = smul.addr %s2067, 16
          %s2069 = scalar_lea.vmem [#allocation17], %s2068
          %2070 = dma.done %s2066, 256
        $region172: #{tpu_custom_call.1} parent=167 // pred_fallthru
          _
        // Predicated region
        $region173: #{tpu_custom_call.1} parent=167 // pred_check
          %p2071 = pneg %p631
        $region174: #{tpu_custom_call.1} parent=167 // pred_check_branch
          %2073 = sbr.rel (%p2071) target = $region176
        $region175: #{tpu_custom_call.1} parent=167 // pred_region
          %s2074 = sand.u32 %s616, 1
          %s2075 = scalar_lea.sflag [#allocation19], %s2074
          %s2076 = sand.u32 %s616, 1
          %s2077 = smul.addr %s2076, 8
          %s2078 = scalar_lea.vmem [#allocation18], %s2077
          %2079 = dma.done %s2075, 128
        $region176: #{tpu_custom_call.1} parent=167 // pred_fallthru
          _
      $region168: #{tpu_custom_call.1} parent=5 // pred_fallthru
        _
    $region6: #{tpu_custom_call.1} parent=1 // loop_footer
      %s50 = sadd.s32 1, %s46
    $region7: #{tpu_custom_call.1} parent=1 // loop_footer_branch
      %45 = sbr.rel target = $region3
    $region8: #{tpu_custom_call.1} parent=1 // loop_exit
      _
    %2080 = vsyncpa [#allocation3], 1
    %s2081 = scalar_lea.sflag [#allocation3], 1
    %2082 = vsyncpa %s2081, 1
    %2083 = vsyncpa [#allocation6], 1
    %2084 = vsyncpa [#allocation9], 1
    %2085 = vsyncpa [#allocation12], 1
    %2086 = vsyncpa [#allocation15], 1
    %2087 = vsyncpa [#allocation4], 1
    %s2088 = scalar_lea.sflag [#allocation4], 1
    %2089 = vsyncpa %s2088, 1
    %2090 = vsyncpa [#allocation19], 1
    %s2091 = scalar_lea.sflag [#allocation19], 1
    %2092 = vsyncpa %s2091, 1

</llo_original>
